<compile_context>
chip_gen: v7x
topology: tpu7x:2x2x1
jax: 0.10.0
libtpu: 0.0.40
codegen_flags: <defaults>
</compile_context>

<pallas_src>
import functools

import jax
import jax.numpy as jnp
from jax.experimental import pallas as pl
from jax.experimental.pallas import tpu as pltpu

LN_EPS = 1e-5                 # nn.LayerNorm default eps
INV_SQRT2 = 0.7071067811865476


def _erf(x):
    # Abramowitz & Stegun 7.1.26 rational approximation (max abs err ~1.5e-7
    # with an exact divide).  The divide uses the EUP approximate reciprocal
    # (separate issue slot); the extra ~2^-12 relative error is well inside the
    # test tolerance — switch to an exact divide if bit-parity with F.gelu is
    # ever required.
    a1, a2, a3, a4, a5 = (0.254829592, -0.284496736, 1.421413741,
                          -1.453152027, 1.061405429)
    p = 0.3275911
    sgn = jnp.where(x >= 0.0, 1.0, -1.0)
    ax = jnp.abs(x)
    t = pl.reciprocal(1.0 + p * ax, approx=True)
    poly = ((((a5 * t + a4) * t + a3) * t + a2) * t + a1) * t
    return sgn * (1.0 - poly * jnp.exp(-ax * ax))


def _gelu_exact(x):
    # Matches F.gelu default (approximate='none', erf-based).
    return 0.5 * x * (1.0 + _erf(x * INV_SQRT2))


def _layernorm_gelu(y, gamma, beta):
    # Single-pass LN stats (E[x], E[x^2]); var clamped at 0 as cheap insurance
    # against cancellation on near-constant rows (review correctness note).
    mu = jnp.mean(y, axis=-1, keepdims=True)
    ms = jnp.mean(y * y, axis=-1, keepdims=True)
    var = jnp.maximum(ms - mu * mu, 0.0)
    yn = (y - mu) * jax.lax.rsqrt(var + LN_EPS)
    return _gelu_exact(yn * gamma + beta)


def _conv_ln_gelu(x, w_ref, b_ref, g_ref, be_ref, masks, T, K):
    """Conv1d (reflect 'same') + LayerNorm + GELU on row-flattened x (rows, D).

    rows = bb*T with bb batch elements stacked along the sublane axis.  Each
    tap is a pltpu.roll of x along rows; the rows where the roll wrapped across
    a reflect boundary / batch seam are patched with jnp.where against the
    precomputed row masks.  No im2col scratch, no per-batch Python store loops.
    """
    rows = x.shape[0]
    P = (K - 1) // 2

    # rolled[s][r] = x[(r + s) % rows]  (wrap fixed up by the masks below)
    rolled = {0: x}
    for s in range(1, P + 1):
        rolled[s] = pltpu.roll(x, shift=(rows - s) % rows, axis=0)
        rolled[-s] = pltpu.roll(x, shift=s, axis=0)

    # K small dots: MXU utilization is irrelevant here (huge slack at D=32),
    # and this avoids any scratch/store traffic entirely.
    acc = jnp.dot(x, w_ref[P], preferred_element_type=jnp.float32)
    for s in list(range(-P, 0)) + list(range(1, P + 1)):
        tap = rolled[s]
        if s < 0:
            # left taps: rows t in [0, -s) reflect to source x[-t - s]
            for t in range(-s):
                tap = jnp.where(masks[t], rolled[-2 * t - s], tap)
        else:
            # right taps: rows t in [T-s, T) reflect to source x[2(T-1) - t - s]
            for t in range(T - s, T):
                tap = jnp.where(masks[t], rolled[2 * (T - 1) - 2 * t - s], tap)
        acc = acc + jnp.dot(tap, w_ref[s + P], preferred_element_type=jnp.float32)

    acc = acc + b_ref[...]
    return _layernorm_gelu(acc, g_ref[...], be_ref[...])


def enc_conv_block_kernel(x_ref, w1_ref, b1_ref, g1_ref, be1_ref,
                          w2_ref, b2_ref, g2_ref, be2_ref, o_ref, *, bb, T):
    rows, D = x_ref.shape
    K = w1_ref.shape[0]
    P = (K - 1) // 2

    # Row masks for the reflect boundary rows of every batch element in the
    # block (local time index in [0,P) and [T-P,T)).  Built as ORs of equality
    # compares on a plain 2-D iota (guaranteed lowering, a few cheap VPU ops),
    # computed once and reused by both convs.
    row = jax.lax.broadcasted_iota(jnp.int32, (rows, D), 0)
    masks = {}
    for t in list(range(P)) + list(range(T - P, T)):
        m = row == t
        for i in range(1, bb):
            m = m | (row == i * T + t)
        masks[t] = m

    x = x_ref[...].astype(jnp.float32)
    h = _conv_ln_gelu(x, w1_ref, b1_ref, g1_ref, be1_ref, masks, T, K)
    h2 = _conv_ln_gelu(h, w2_ref, b2_ref, g2_ref, be2_ref, masks, T, K)

    # Residual: one vectorized store for the whole block.
    # TODO(synk): for very long T, chunk the LN/GELU + conv2 tap prep over
    # <=128-row slices (with 1-row halos) to keep vreg liveness bounded.
    o_ref[...] = (x + h2).astype(o_ref.dtype)


def _num_tensorcores():
    """TensorCores per chip, queried at trace time; conservative fallback = 1."""
    try:
        info = pltpu.get_tpu_info()
        for attr in ("tensorcore_count", "num_tensorcores", "num_cores",
                     "core_count", "cores_per_chip"):
            v = getattr(info, attr, None)
            if isinstance(v, int) and v > 0:
                return v
    except Exception:
        pass
    try:
        if "v7" in jax.devices()[0].device_kind.lower():
            return 2
    except Exception:
        pass
    return 1


def _pick_batch_block(B, T, num_tc, rows_target=128):
    """Batch elements per grid step.

    rows_target keeps each live f32 (rows, 32) value at <=16 vregs so the
    conv/LN/GELU chain stays out of spill territory (review item 4); raising it
    on v7x needs the chunked inner loop first.  Only chips with >=2 TensorCores
    force >= num_tc grid steps so the "parallel" axis can shard across cores;
    single-TC chips take the largest block (review items 6-8).  Candidates keep
    the row block sublane-aligned (or full-extent).
    """
    divs = [d for d in range(1, B + 1) if B % d == 0]
    divs = [d for d in divs if d == B or (d * T) % 8 == 0] or [B]
    small = [d for d in divs if d * T <= max(rows_target, T)]
    bb = max(small) if small else min(divs)
    if num_tc >= 2 and small:
        multi = [d for d in small if B // d >= num_tc]
        if multi:
            bb = max(multi)
    return bb


def _vmem_limit_bytes(rows, D, K):
    """Scoped-VMEM request computed from actual buffer sizes (+ headroom)."""
    blk = rows * D * 4                      # one (rows, D) f32 block
    params = 2 * (K * D * D + 4 * D) * 4    # both convs' weights + bias/LN rows
    need = 2 * 2 * blk + 2 * params         # double-buffered in+out + params
    return int(min(64 * 1024 * 1024, max(4 * 1024 * 1024, 8 * need)))


def prepare_params(w1, b1, g1, be1, w2, b2, g2, be2, *, kernel_size):
    """One-time parameter prep outside the jitted hot path.

    Conv1d weight (D_out, D_in, K) -> per-tap matmul form (K, D_in, D_out);
    biases / LN params -> (1, D) f32 rows.  Everything stays f32: the MXU is
    nowhere near binding at these sizes, and f32 keeps the kernel bit-closer to
    the PyTorch reference.
    """
    assert kernel_size % 2 == 1, "reflect 'same' padding requires odd kernel_size"

    def wtap(w):
        d_out, d_in, k = w.shape
        assert k == kernel_size
        return jnp.transpose(w, (2, 1, 0)).astype(jnp.float32)   # (K, D_in, D_out)

    vec = lambda v: v.reshape(1, -1).astype(jnp.float32)
    return (wtap(w1), vec(b1), vec(g1), vec(be1),
            wtap(w2), vec(b2), vec(g2), vec(be2))


@jax.jit
def enc_conv_block(x, w1t, b1, g1, be1, w2t, b2, g2, be2):
    """x: (B, T, D) float32; w*t: (K, D, D) f32; b*/g*/be*: (1, D) f32."""
    B, T, D = x.shape
    K = w1t.shape[0]
    P = (K - 1) // 2
    assert K % 2 == 1 and T > P, "reflect 'same' padding needs odd K and T > K//2"

    bb = _pick_batch_block(B, T, _num_tensorcores())
    rows = bb * T
    grid = (B // bb,)

    # Batch folded into rows (free, contiguous reshape) so the kernel sees one
    # (rows, D) slab per grid step (review item 3).
    x2 = x.reshape(B * T, D)

    rspec = pl.BlockSpec((rows, D), lambda g: (g, 0))
    wspec = pl.BlockSpec((K, D, D), lambda g: (0, 0, 0))
    vspec = pl.BlockSpec((1, D), lambda g: (0, 0))

    # TODO(synk): lane-dense folding ((T,32)->(T/4,128) view with a segmented
    # LayerNorm reduce) is the remaining layout lever if the surrounding model
    # can consume a channels-folded layout (review item 5).
    out2 = pl.pallas_call(
        functools.partial(enc_conv_block_kernel, bb=bb, T=T),
        out_shape=jax.ShapeDtypeStruct((B * T, D), x.dtype),
        grid=grid,
        in_specs=[rspec,
                  wspec, vspec, vspec, vspec,     # conv1 / ln1
                  wspec, vspec, vspec, vspec],    # conv2 / ln2
        out_specs=rspec,
        compiler_params=pltpu.CompilerParams(
            dimension_semantics=("parallel",),
            vmem_limit_bytes=_vmem_limit_bytes(rows, D, K)),
    )(x2, w1t, b1, g1, be1, w2t, b2, g2, be2)
    return out2.reshape(B, T, D)


def reference(x, w1, b1, g1, be1, w2, b2, g2, be2, kernel_size):
    """Pure-JAX f32 reference matching the PyTorch forward (eval mode)."""
    P = (kernel_size - 1) // 2

    def conv_block(h, w, b, g, be):
        T = h.shape[1]
        hp = jnp.pad(h, ((0, 0), (P, P), (0, 0)), mode="reflect")
        wt = jnp.transpose(w, (2, 1, 0))
        out = sum(jnp.einsum("btd,de->bte", hp[:, j:j + T, :], wt[j])
                  for j in range(kernel_size)) + b
        mu = out.mean(-1, keepdims=True)
        var = ((out - mu) ** 2).mean(-1, keepdims=True)
        out = (out - mu) * jax.lax.rsqrt(var + LN_EPS) * g + be
        return jax.nn.gelu(out, approximate=False)

    return x + conv_block(conv_block(x, w1, b1, g1, be1), w2, b2, g2, be2)


if __name__ == "__main__":
    # Small shapes consistent with the module:
    #   d_hid_encoder = 32, kernel_size = 3, batch = 2, seq = 16
    B, T, D, K = 2, 16, 32, 3
    key = jax.random.PRNGKey(0)
    k_x, k_w1, k_b1, k_w2, k_b2 = jax.random.split(key, 5)

    x = jax.random.normal(k_x, (B, T, D), jnp.float32)

    # Synthetic params (Conv1d weight (D_out, D_in, K), bias (D_out,))
    scale = 1.0 / (D * K) ** 0.5
    w1 = jax.random.uniform(k_w1, (D, D, K), jnp.float32, -scale, scale)
    b1 = jax.random.uniform(k_b1, (D,), jnp.float32, -scale, scale)
    w2 = jax.random.uniform(k_w2, (D, D, K), jnp.float32, -scale, scale)
    b2 = jax.random.uniform(k_b2, (D,), jnp.float32, -scale, scale)
    # LayerNorm params at PyTorch default init
    g1 = jnp.ones((D,), jnp.float32)
    be1 = jnp.zeros((D,), jnp.float32)
    g2 = jnp.ones((D,), jnp.float32)
    be2 = jnp.zeros((D,), jnp.float32)

    params = prepare_params(w1, b1, g1, be1, w2, b2, g2, be2, kernel_size=K)

    out = jax.block_until_ready(enc_conv_block(x, *params))

    ref = reference(x, w1, b1, g1, be1, w2, b2, g2, be2, K)
    assert out.shape == (B, T, D)
    max_err = float(jnp.max(jnp.abs(out - ref)))
    # f32 MXU/VPU math; only the erf rational approximation (+ approx
    # reciprocal) deviates from the exact-erf reference — a few 1e-3 at most.
    assert jnp.allclose(out, ref, atol=2e-2, rtol=2e-2), max_err

    print("KERNEL_OK")
</pallas_src>

<mosaic_0001>
module attributes {stable_mosaic.version = 11 : i64} {
  func.func @enc_conv_block_kernel(%arg0: i32, %arg1: memref<32x32xf32, #tpu.memory_space<vmem>>, %arg2: memref<3x32x32xf32, #tpu.memory_space<vmem>>, %arg3: memref<1x32xf32, #tpu.memory_space<vmem>>, %arg4: memref<1x32xf32, #tpu.memory_space<vmem>>, %arg5: memref<1x32xf32, #tpu.memory_space<vmem>>, %arg6: memref<3x32x32xf32, #tpu.memory_space<vmem>>, %arg7: memref<1x32xf32, #tpu.memory_space<vmem>>, %arg8: memref<1x32xf32, #tpu.memory_space<vmem>>, %arg9: memref<1x32xf32, #tpu.memory_space<vmem>>, %arg10: memref<32x32xf32, #tpu.memory_space<vmem>>) attributes {dimension_semantics = [#tpu.dimension_semantics<parallel>], iteration_bounds = array<i64: 1>, scalar_prefetch = 0 : i64, scratch_operands = 0 : i64, tpu.core_type = #tpu.core_type<tc>, window_params = [{transform_indices = @transform_0, window_bounds = array<i64: 32, 32>}, {pipeline_mode = #tpu.pipeline_mode<synchronous>, transform_indices = @transform_1, window_bounds = array<i64: 3, 32, 32>}, {pipeline_mode = #tpu.pipeline_mode<synchronous>, transform_indices = @transform_2, window_bounds = array<i64: 1, 32>}, {pipeline_mode = #tpu.pipeline_mode<synchronous>, transform_indices = @transform_3, window_bounds = array<i64: 1, 32>}, {pipeline_mode = #tpu.pipeline_mode<synchronous>, transform_indices = @transform_4, window_bounds = array<i64: 1, 32>}, {pipeline_mode = #tpu.pipeline_mode<synchronous>, transform_indices = @transform_5, window_bounds = array<i64: 3, 32, 32>}, {pipeline_mode = #tpu.pipeline_mode<synchronous>, transform_indices = @transform_6, window_bounds = array<i64: 1, 32>}, {pipeline_mode = #tpu.pipeline_mode<synchronous>, transform_indices = @transform_7, window_bounds = array<i64: 1, 32>}, {pipeline_mode = #tpu.pipeline_mode<synchronous>, transform_indices = @transform_8, window_bounds = array<i64: 1, 32>}, {transform_indices = @transform_9, window_bounds = array<i64: 32, 32>}]} {
    %0 = tpu.iota {dimensions = array<i32: 0>} : vector<32x32xi32>
    %c0_i32 = arith.constant 0 : i32
    %1 = vector.broadcast %c0_i32 : i32 to vector<32x32xi32>
    %2 = arith.cmpi eq, %0, %1 : vector<32x32xi32>
    %c16_i32 = arith.constant 16 : i32
    %3 = vector.broadcast %c16_i32 : i32 to vector<32x32xi32>
    %4 = arith.cmpi eq, %0, %3 : vector<32x32xi32>
    %5 = arith.ori %2, %4 : vector<32x32xi1>
    %c15_i32 = arith.constant 15 : i32
    %6 = vector.broadcast %c15_i32 : i32 to vector<32x32xi32>
    %7 = arith.cmpi eq, %0, %6 : vector<32x32xi32>
    %c31_i32 = arith.constant 31 : i32
    %8 = vector.broadcast %c31_i32 : i32 to vector<32x32xi32>
    %9 = arith.cmpi eq, %0, %8 : vector<32x32xi32>
    %10 = arith.ori %7, %9 : vector<32x32xi1>
    %c0 = arith.constant 0 : index
    %c0_0 = arith.constant 0 : index
    %11 = vector.load %arg1[%c0, %c0_0] : memref<32x32xf32, #tpu.memory_space<vmem>>, vector<32x32xf32>
    %c31_i32_1 = arith.constant 31 : i32
    %12 = tpu.dynamic_rotate %11 by %c31_i32_1 dim 0 : vector<32x32xf32>, i32 -> vector<32x32xf32>
    %c1_i32 = arith.constant 1 : i32
    %13 = tpu.dynamic_rotate %11 by %c1_i32 dim 0 : vector<32x32xf32>, i32 -> vector<32x32xf32>
    %c1 = arith.constant 1 : index
    %c0_2 = arith.constant 0 : index
    %c0_3 = arith.constant 0 : index
    %14 = vector.load %arg2[%c1, %c0_2, %c0_3] : memref<3x32x32xf32, #tpu.memory_space<vmem>>, vector<1x32x32xf32>
    %15 = vector.shape_cast %14 : vector<1x32x32xf32> to vector<32x32xf32>
    %cst = arith.constant dense<0.000000e+00> : vector<32x32xf32>
    %16 = tpu.matmul %11, %15, %cst {dimension_numbers = #tpu.dot_dimension_numbers<[1], [0], [0], [1], [0, 0, 1, 1], [], []>} : vector<32x32xf32>, vector<32x32xf32>, vector<32x32xf32> -> vector<32x32xf32>
    %17 = arith.select %5, %12, %13 : vector<32x32xi1>, vector<32x32xf32>
    %c0_4 = arith.constant 0 : index
    %c0_5 = arith.constant 0 : index
    %c0_6 = arith.constant 0 : index
    %18 = vector.load %arg2[%c0_4, %c0_5, %c0_6] : memref<3x32x32xf32, #tpu.memory_space<vmem>>, vector<1x32x32xf32>
    %19 = vector.shape_cast %18 : vector<1x32x32xf32> to vector<32x32xf32>
    %cst_7 = arith.constant dense<0.000000e+00> : vector<32x32xf32>
    %20 = tpu.matmul %17, %19, %cst_7 {dimension_numbers = #tpu.dot_dimension_numbers<[1], [0], [0], [1], [0, 0, 1, 1], [], []>} : vector<32x32xf32>, vector<32x32xf32>, vector<32x32xf32> -> vector<32x32xf32>
    %21 = arith.addf %16, %20 : vector<32x32xf32>
    %22 = arith.select %10, %13, %12 : vector<32x32xi1>, vector<32x32xf32>
    %c2 = arith.constant 2 : index
    %c0_8 = arith.constant 0 : index
    %c0_9 = arith.constant 0 : index
    %23 = vector.load %arg2[%c2, %c0_8, %c0_9] : memref<3x32x32xf32, #tpu.memory_space<vmem>>, vector<1x32x32xf32>
    %24 = vector.shape_cast %23 : vector<1x32x32xf32> to vector<32x32xf32>
    %cst_10 = arith.constant dense<0.000000e+00> : vector<32x32xf32>
    %25 = tpu.matmul %22, %24, %cst_10 {dimension_numbers = #tpu.dot_dimension_numbers<[1], [0], [0], [1], [0, 0, 1, 1], [], []>} : vector<32x32xf32>, vector<32x32xf32>, vector<32x32xf32> -> vector<32x32xf32>
    %26 = arith.addf %21, %25 : vector<32x32xf32>
    %c0_11 = arith.constant 0 : index
    %c0_12 = arith.constant 0 : index
    %27 = vector.load %arg3[%c0_11, %c0_12] : memref<1x32xf32, #tpu.memory_space<vmem>>, vector<1x32xf32>
    %28 = vector.broadcast %27 : vector<1x32xf32> to vector<32x32xf32>
    %29 = arith.addf %26, %28 : vector<32x32xf32>
    %c0_13 = arith.constant 0 : index
    %c0_14 = arith.constant 0 : index
    %30 = vector.load %arg4[%c0_13, %c0_14] : memref<1x32xf32, #tpu.memory_space<vmem>>, vector<1x32xf32>
    %c0_15 = arith.constant 0 : index
    %c0_16 = arith.constant 0 : index
    %31 = vector.load %arg5[%c0_15, %c0_16] : memref<1x32xf32, #tpu.memory_space<vmem>>, vector<1x32xf32>
    %cst_17 = arith.constant dense<0.000000e+00> : vector<32xf32>
    %32 = vector.multi_reduction <add>, %29, %cst_17 [1] : vector<32x32xf32> to vector<32xf32>
    %33 = vector.shape_cast %32 : vector<32xf32> to vector<32x1xf32>
    %cst_18 = arith.constant 3.200000e+01 : f32
    %34 = vector.broadcast %cst_18 : f32 to vector<32x1xf32>
    %35 = arith.divf %33, %34 : vector<32x1xf32>
    %36 = arith.mulf %29, %29 : vector<32x32xf32>
    %cst_19 = arith.constant dense<0.000000e+00> : vector<32xf32>
    %37 = vector.multi_reduction <add>, %36, %cst_19 [1] : vector<32x32xf32> to vector<32xf32>
    %38 = vector.shape_cast %37 : vector<32xf32> to vector<32x1xf32>
    %cst_20 = arith.constant 3.200000e+01 : f32
    %39 = vector.broadcast %cst_20 : f32 to vector<32x1xf32>
    %40 = arith.divf %38, %39 : vector<32x1xf32>
    %41 = arith.mulf %35, %35 : vector<32x1xf32>
    %42 = arith.subf %40, %41 : vector<32x1xf32>
    %cst_21 = arith.constant 0.000000e+00 : f32
    %43 = vector.broadcast %cst_21 : f32 to vector<32x1xf32>
    %44 = arith.maximumf %42, %43 : vector<32x1xf32>
    %45 = vector.broadcast %35 : vector<32x1xf32> to vector<32x32xf32>
    %46 = arith.subf %29, %45 : vector<32x32xf32>
    %cst_22 = arith.constant 9.99999974E-6 : f32
    %47 = vector.broadcast %cst_22 : f32 to vector<32x1xf32>
    %48 = arith.addf %44, %47 : vector<32x1xf32>
    %49 = math.rsqrt %48 : vector<32x1xf32>
    %50 = vector.broadcast %49 : vector<32x1xf32> to vector<32x32xf32>
    %51 = arith.mulf %46, %50 : vector<32x32xf32>
    %52 = vector.broadcast %30 : vector<1x32xf32> to vector<32x32xf32>
    %53 = arith.mulf %51, %52 : vector<32x32xf32>
    %54 = vector.broadcast %31 : vector<1x32xf32> to vector<32x32xf32>
    %55 = arith.addf %53, %54 : vector<32x32xf32>
    %cst_23 = arith.constant 5.000000e-01 : f32
    %56 = vector.broadcast %cst_23 : f32 to vector<32x32xf32>
    %57 = arith.mulf %56, %55 : vector<32x32xf32>
    %cst_24 = arith.constant 0.707106769 : f32
    %58 = vector.broadcast %cst_24 : f32 to vector<32x32xf32>
    %59 = arith.mulf %55, %58 : vector<32x32xf32>
    %cst_25 = arith.constant 0.000000e+00 : f32
    %60 = vector.broadcast %cst_25 : f32 to vector<32x32xf32>
    %61 = arith.cmpf oge, %59, %60 : vector<32x32xf32>
    %cst_26 = arith.constant 1.000000e+00 : f32
    %cst_27 = arith.constant -1.000000e+00 : f32
    %62 = vector.broadcast %cst_26 : f32 to vector<32x32xf32>
    %63 = vector.broadcast %cst_27 : f32 to vector<32x32xf32>
    %64 = arith.select %61, %62, %63 : vector<32x32xi1>, vector<32x32xf32>
    %65 = math.absf %59 : vector<32x32xf32>
    %cst_28 = arith.constant 0.327591091 : f32
    %66 = vector.broadcast %cst_28 : f32 to vector<32x32xf32>
    %67 = arith.mulf %66, %65 : vector<32x32xf32>
    %cst_29 = arith.constant 1.000000e+00 : f32
    %68 = vector.broadcast %cst_29 : f32 to vector<32x32xf32>
    %69 = arith.addf %68, %67 : vector<32x32xf32>
    %70 = tpu.reciprocal %69 {approx = true} : vector<32x32xf32> -> vector<32x32xf32>
    %cst_30 = arith.constant 1.06140542 : f32
    %71 = vector.broadcast %cst_30 : f32 to vector<32x32xf32>
    %72 = arith.mulf %71, %70 : vector<32x32xf32>
    %cst_31 = arith.constant -1.45315206 : f32
    %73 = vector.broadcast %cst_31 : f32 to vector<32x32xf32>
    %74 = arith.addf %72, %73 : vector<32x32xf32>
    %75 = arith.mulf %74, %70 : vector<32x32xf32>
    %cst_32 = arith.constant 1.42141378 : f32
    %76 = vector.broadcast %cst_32 : f32 to vector<32x32xf32>
    %77 = arith.addf %75, %76 : vector<32x32xf32>
    %78 = arith.mulf %77, %70 : vector<32x32xf32>
    %cst_33 = arith.constant -0.284496725 : f32
    %79 = vector.broadcast %cst_33 : f32 to vector<32x32xf32>
    %80 = arith.addf %78, %79 : vector<32x32xf32>
    %81 = arith.mulf %80, %70 : vector<32x32xf32>
    %cst_34 = arith.constant 0.254829586 : f32
    %82 = vector.broadcast %cst_34 : f32 to vector<32x32xf32>
    %83 = arith.addf %81, %82 : vector<32x32xf32>
    %84 = arith.mulf %83, %70 : vector<32x32xf32>
    %cst_35 = arith.constant 0.000000e+00 : f32
    %85 = vector.broadcast %cst_35 : f32 to vector<32x32xf32>
    %86 = arith.subf %85, %65 : vector<32x32xf32>
    %87 = arith.mulf %86, %65 : vector<32x32xf32>
    %88 = math.exp %87 : vector<32x32xf32>
    %89 = arith.mulf %84, %88 : vector<32x32xf32>
    %cst_36 = arith.constant 1.000000e+00 : f32
    %90 = vector.broadcast %cst_36 : f32 to vector<32x32xf32>
    %91 = arith.subf %90, %89 : vector<32x32xf32>
    %92 = arith.mulf %64, %91 : vector<32x32xf32>
    %cst_37 = arith.constant 1.000000e+00 : f32
    %93 = vector.broadcast %cst_37 : f32 to vector<32x32xf32>
    %94 = arith.addf %93, %92 : vector<32x32xf32>
    %95 = arith.mulf %57, %94 : vector<32x32xf32>
    %c31_i32_38 = arith.constant 31 : i32
    %96 = tpu.dynamic_rotate %95 by %c31_i32_38 dim 0 : vector<32x32xf32>, i32 -> vector<32x32xf32>
    %c1_i32_39 = arith.constant 1 : i32
    %97 = tpu.dynamic_rotate %95 by %c1_i32_39 dim 0 : vector<32x32xf32>, i32 -> vector<32x32xf32>
    %c1_40 = arith.constant 1 : index
    %c0_41 = arith.constant 0 : index
    %c0_42 = arith.constant 0 : index
    %98 = vector.load %arg6[%c1_40, %c0_41, %c0_42] : memref<3x32x32xf32, #tpu.memory_space<vmem>>, vector<1x32x32xf32>
    %99 = vector.shape_cast %98 : vector<1x32x32xf32> to vector<32x32xf32>
    %cst_43 = arith.constant dense<0.000000e+00> : vector<32x32xf32>
    %100 = tpu.matmul %95, %99, %cst_43 {dimension_numbers = #tpu.dot_dimension_numbers<[1], [0], [0], [1], [0, 0, 1, 1], [], []>} : vector<32x32xf32>, vector<32x32xf32>, vector<32x32xf32> -> vector<32x32xf32>
    %101 = arith.select %5, %96, %97 : vector<32x32xi1>, vector<32x32xf32>
    %c0_44 = arith.constant 0 : index
    %c0_45 = arith.constant 0 : index
    %c0_46 = arith.constant 0 : index
    %102 = vector.load %arg6[%c0_44, %c0_45, %c0_46] : memref<3x32x32xf32, #tpu.memory_space<vmem>>, vector<1x32x32xf32>
    %103 = vector.shape_cast %102 : vector<1x32x32xf32> to vector<32x32xf32>
    %cst_47 = arith.constant dense<0.000000e+00> : vector<32x32xf32>
    %104 = tpu.matmul %101, %103, %cst_47 {dimension_numbers = #tpu.dot_dimension_numbers<[1], [0], [0], [1], [0, 0, 1, 1], [], []>} : vector<32x32xf32>, vector<32x32xf32>, vector<32x32xf32> -> vector<32x32xf32>
    %105 = arith.addf %100, %104 : vector<32x32xf32>
    %106 = arith.select %10, %97, %96 : vector<32x32xi1>, vector<32x32xf32>
    %c2_48 = arith.constant 2 : index
    %c0_49 = arith.constant 0 : index
    %c0_50 = arith.constant 0 : index
    %107 = vector.load %arg6[%c2_48, %c0_49, %c0_50] : memref<3x32x32xf32, #tpu.memory_space<vmem>>, vector<1x32x32xf32>
    %108 = vector.shape_cast %107 : vector<1x32x32xf32> to vector<32x32xf32>
    %cst_51 = arith.constant dense<0.000000e+00> : vector<32x32xf32>
    %109 = tpu.matmul %106, %108, %cst_51 {dimension_numbers = #tpu.dot_dimension_numbers<[1], [0], [0], [1], [0, 0, 1, 1], [], []>} : vector<32x32xf32>, vector<32x32xf32>, vector<32x32xf32> -> vector<32x32xf32>
    %110 = arith.addf %105, %109 : vector<32x32xf32>
    %c0_52 = arith.constant 0 : index
    %c0_53 = arith.constant 0 : index
    %111 = vector.load %arg7[%c0_52, %c0_53] : memref<1x32xf32, #tpu.memory_space<vmem>>, vector<1x32xf32>
    %112 = vector.broadcast %111 : vector<1x32xf32> to vector<32x32xf32>
    %113 = arith.addf %110, %112 : vector<32x32xf32>
    %c0_54 = arith.constant 0 : index
    %c0_55 = arith.constant 0 : index
    %114 = vector.load %arg8[%c0_54, %c0_55] : memref<1x32xf32, #tpu.memory_space<vmem>>, vector<1x32xf32>
    %c0_56 = arith.constant 0 : index
    %c0_57 = arith.constant 0 : index
    %115 = vector.load %arg9[%c0_56, %c0_57] : memref<1x32xf32, #tpu.memory_space<vmem>>, vector<1x32xf32>
    %cst_58 = arith.constant dense<0.000000e+00> : vector<32xf32>
    %116 = vector.multi_reduction <add>, %113, %cst_58 [1] : vector<32x32xf32> to vector<32xf32>
    %117 = vector.shape_cast %116 : vector<32xf32> to vector<32x1xf32>
    %cst_59 = arith.constant 3.200000e+01 : f32
    %118 = vector.broadcast %cst_59 : f32 to vector<32x1xf32>
    %119 = arith.divf %117, %118 : vector<32x1xf32>
    %120 = arith.mulf %113, %113 : vector<32x32xf32>
    %cst_60 = arith.constant dense<0.000000e+00> : vector<32xf32>
    %121 = vector.multi_reduction <add>, %120, %cst_60 [1] : vector<32x32xf32> to vector<32xf32>
    %122 = vector.shape_cast %121 : vector<32xf32> to vector<32x1xf32>
    %cst_61 = arith.constant 3.200000e+01 : f32
    %123 = vector.broadcast %cst_61 : f32 to vector<32x1xf32>
    %124 = arith.divf %122, %123 : vector<32x1xf32>
    %125 = arith.mulf %119, %119 : vector<32x1xf32>
    %126 = arith.subf %124, %125 : vector<32x1xf32>
    %cst_62 = arith.constant 0.000000e+00 : f32
    %127 = vector.broadcast %cst_62 : f32 to vector<32x1xf32>
    %128 = arith.maximumf %126, %127 : vector<32x1xf32>
    %129 = vector.broadcast %119 : vector<32x1xf32> to vector<32x32xf32>
    %130 = arith.subf %113, %129 : vector<32x32xf32>
    %cst_63 = arith.constant 9.99999974E-6 : f32
    %131 = vector.broadcast %cst_63 : f32 to vector<32x1xf32>
    %132 = arith.addf %128, %131 : vector<32x1xf32>
    %133 = math.rsqrt %132 : vector<32x1xf32>
    %134 = vector.broadcast %133 : vector<32x1xf32> to vector<32x32xf32>
    %135 = arith.mulf %130, %134 : vector<32x32xf32>
    %136 = vector.broadcast %114 : vector<1x32xf32> to vector<32x32xf32>
    %137 = arith.mulf %135, %136 : vector<32x32xf32>
    %138 = vector.broadcast %115 : vector<1x32xf32> to vector<32x32xf32>
    %139 = arith.addf %137, %138 : vector<32x32xf32>
    %cst_64 = arith.constant 5.000000e-01 : f32
    %140 = vector.broadcast %cst_64 : f32 to vector<32x32xf32>
    %141 = arith.mulf %140, %139 : vector<32x32xf32>
    %cst_65 = arith.constant 0.707106769 : f32
    %142 = vector.broadcast %cst_65 : f32 to vector<32x32xf32>
    %143 = arith.mulf %139, %142 : vector<32x32xf32>
    %cst_66 = arith.constant 0.000000e+00 : f32
    %144 = vector.broadcast %cst_66 : f32 to vector<32x32xf32>
    %145 = arith.cmpf oge, %143, %144 : vector<32x32xf32>
    %cst_67 = arith.constant 1.000000e+00 : f32
    %cst_68 = arith.constant -1.000000e+00 : f32
    %146 = vector.broadcast %cst_67 : f32 to vector<32x32xf32>
    %147 = vector.broadcast %cst_68 : f32 to vector<32x32xf32>
    %148 = arith.select %145, %146, %147 : vector<32x32xi1>, vector<32x32xf32>
    %149 = math.absf %143 : vector<32x32xf32>
    %cst_69 = arith.constant 0.327591091 : f32
    %150 = vector.broadcast %cst_69 : f32 to vector<32x32xf32>
    %151 = arith.mulf %150, %149 : vector<32x32xf32>
    %cst_70 = arith.constant 1.000000e+00 : f32
    %152 = vector.broadcast %cst_70 : f32 to vector<32x32xf32>
    %153 = arith.addf %152, %151 : vector<32x32xf32>
    %154 = tpu.reciprocal %153 {approx = true} : vector<32x32xf32> -> vector<32x32xf32>
    %cst_71 = arith.constant 1.06140542 : f32
    %155 = vector.broadcast %cst_71 : f32 to vector<32x32xf32>
    %156 = arith.mulf %155, %154 : vector<32x32xf32>
    %cst_72 = arith.constant -1.45315206 : f32
    %157 = vector.broadcast %cst_72 : f32 to vector<32x32xf32>
    %158 = arith.addf %156, %157 : vector<32x32xf32>
    %159 = arith.mulf %158, %154 : vector<32x32xf32>
    %cst_73 = arith.constant 1.42141378 : f32
    %160 = vector.broadcast %cst_73 : f32 to vector<32x32xf32>
    %161 = arith.addf %159, %160 : vector<32x32xf32>
    %162 = arith.mulf %161, %154 : vector<32x32xf32>
    %cst_74 = arith.constant -0.284496725 : f32
    %163 = vector.broadcast %cst_74 : f32 to vector<32x32xf32>
    %164 = arith.addf %162, %163 : vector<32x32xf32>
    %165 = arith.mulf %164, %154 : vector<32x32xf32>
    %cst_75 = arith.constant 0.254829586 : f32
    %166 = vector.broadcast %cst_75 : f32 to vector<32x32xf32>
    %167 = arith.addf %165, %166 : vector<32x32xf32>
    %168 = arith.mulf %167, %154 : vector<32x32xf32>
    %cst_76 = arith.constant 0.000000e+00 : f32
    %169 = vector.broadcast %cst_76 : f32 to vector<32x32xf32>
    %170 = arith.subf %169, %149 : vector<32x32xf32>
    %171 = arith.mulf %170, %149 : vector<32x32xf32>
    %172 = math.exp %171 : vector<32x32xf32>
    %173 = arith.mulf %168, %172 : vector<32x32xf32>
    %cst_77 = arith.constant 1.000000e+00 : f32
    %174 = vector.broadcast %cst_77 : f32 to vector<32x32xf32>
    %175 = arith.subf %174, %173 : vector<32x32xf32>
    %176 = arith.mulf %148, %175 : vector<32x32xf32>
    %cst_78 = arith.constant 1.000000e+00 : f32
    %177 = vector.broadcast %cst_78 : f32 to vector<32x32xf32>
    %178 = arith.addf %177, %176 : vector<32x32xf32>
    %179 = arith.mulf %141, %178 : vector<32x32xf32>
    %180 = arith.addf %11, %179 : vector<32x32xf32>
    %c0_79 = arith.constant 0 : index
    %c0_80 = arith.constant 0 : index
    %181 = vector.load %arg10[%c0_79, %c0_80] : memref<32x32xf32, #tpu.memory_space<vmem>>, vector<32x32xf32>
    tpu.vector_store %arg10[%c0_79, %c0_80], %180 {strides = array<i32>} : memref<32x32xf32, #tpu.memory_space<vmem>>, vector<32x32xf32>,
    return
  }
  func.func @transform_0(%arg0: i32) -> (i32, i32) {
    %c0_i32 = arith.constant 0 : i32
    %c0_i32_0 = arith.constant 0 : i32
    return %arg0, %c0_i32 : i32, i32
  }
  func.func @transform_1(%arg0: i32) -> (i32, i32, i32) {
    %c0_i32 = arith.constant 0 : i32
    %c0_i32_0 = arith.constant 0 : i32
    %c0_i32_1 = arith.constant 0 : i32
    %c0_i32_2 = arith.constant 0 : i32
    return %c0_i32, %c0_i32_0, %c0_i32_1 : i32, i32, i32
  }
  func.func @transform_2(%arg0: i32) -> (i32, i32) {
    %c0_i32 = arith.constant 0 : i32
    %c0_i32_0 = arith.constant 0 : i32
    %c0_i32_1 = arith.constant 0 : i32
    return %c0_i32, %c0_i32_0 : i32, i32
  }
  func.func @transform_3(%arg0: i32) -> (i32, i32) {
    %c0_i32 = arith.constant 0 : i32
    %c0_i32_0 = arith.constant 0 : i32
    %c0_i32_1 = arith.constant 0 : i32
    return %c0_i32, %c0_i32_0 : i32, i32
  }
  func.func @transform_4(%arg0: i32) -> (i32, i32) {
    %c0_i32 = arith.constant 0 : i32
    %c0_i32_0 = arith.constant 0 : i32
    %c0_i32_1 = arith.constant 0 : i32
    return %c0_i32, %c0_i32_0 : i32, i32
  }
  func.func @transform_5(%arg0: i32) -> (i32, i32, i32) {
    %c0_i32 = arith.constant 0 : i32
    %c0_i32_0 = arith.constant 0 : i32
    %c0_i32_1 = arith.constant 0 : i32
    %c0_i32_2 = arith.constant 0 : i32
    return %c0_i32, %c0_i32_0, %c0_i32_1 : i32, i32, i32
  }
  func.func @transform_6(%arg0: i32) -> (i32, i32) {
    %c0_i32 = arith.constant 0 : i32
    %c0_i32_0 = arith.constant 0 : i32
    %c0_i32_1 = arith.constant 0 : i32
    return %c0_i32, %c0_i32_0 : i32, i32
  }
  func.func @transform_7(%arg0: i32) -> (i32, i32) {
    %c0_i32 = arith.constant 0 : i32
    %c0_i32_0 = arith.constant 0 : i32
    %c0_i32_1 = arith.constant 0 : i32
    return %c0_i32, %c0_i32_0 : i32, i32
  }
  func.func @transform_8(%arg0: i32) -> (i32, i32) {
    %c0_i32 = arith.constant 0 : i32
    %c0_i32_0 = arith.constant 0 : i32
    %c0_i32_1 = arith.constant 0 : i32
    return %c0_i32, %c0_i32_0 : i32, i32
  }
  func.func @transform_9(%arg0: i32) -> (i32, i32) {
    %c0_i32 = arith.constant 0 : i32
    %c0_i32_0 = arith.constant 0 : i32
    return %arg0, %c0_i32 : i32, i32
  }
}

</mosaic_0001>

<llo_original>
// kernel: enc_conv_block.1
$region0: #{enc_conv_block.1}
  #allocation0 [shape = 'u32[]', space=smem, size = 0x4, offset = 0x4, fixed_abs, tag = 'smem constant byte address 0x4 - core index']
  #allocation1 [shape = 'u32[144,128]{1,0:T(1,128)}', space=vmem, size = 0x12000, scoped, tag = 'internal scratch']
  %s0 = inlined_call_operand.hbm [shape: f32[32,32], index: 0, kind: input, shape index: {}]
  %s1 = inlined_call_operand.hbm [shape: f32[3,32,32], index: 1, kind: input, shape index: {}]
  %s2 = inlined_call_operand.vmem [shape: f32[1,32], index: 2, kind: input, shape index: {}]
  %s3 = inlined_call_operand.vmem [shape: f32[1,32], index: 3, kind: input, shape index: {}]
  %s4 = inlined_call_operand.vmem [shape: f32[1,32], index: 4, kind: input, shape index: {}]
  %s5 = inlined_call_operand.hbm [shape: f32[3,32,32], index: 5, kind: input, shape index: {}]
  %s6 = inlined_call_operand.vmem [shape: f32[1,32], index: 6, kind: input, shape index: {}]
  %s7 = inlined_call_operand.vmem [shape: f32[1,32], index: 7, kind: input, shape index: {}]
  %s8 = inlined_call_operand.vmem [shape: f32[1,32], index: 8, kind: input, shape index: {}]
  %s9 = inlined_call_operand.hbm [shape: f32[32,32], index: 9, kind: output, shape index: {}]
  %s10 = sld [smem:[#allocation0]]
  $region58: #{enc_conv_block.1} parent=0
    _
  %s12 = ssub.s32 1, %s10
  %s13 = scalar_select 0, %s12, %s10
  $region1: #{enc_conv_block.1} parent=0
    #allocation2 [shape = 'u8[16384]{0}', space=vmem, size = 0x4000, scoped, tag = 'input window, operand 0, single buffered']
    #allocation3 [shape = 's32[1]{0}', space=sflag, size = 0x4, scoped, tag = 'scoped memory for enc_conv_block.1']
    #allocation4 [shape = 's32[1]{0}', space=sflag, size = 0x4, scoped, tag = 'scoped memory for enc_conv_block.1']
    #allocation5 [shape = 'u8[49152]{0}', space=vmem, size = 0xc000, scoped, tag = 'input window, operand 1, single buffered']
    #allocation6 [shape = 's32[1]{0}', space=sflag, size = 0x4, scoped, tag = 'scoped memory for enc_conv_block.1']
    #allocation7 [shape = 'u8[49152]{0}', space=vmem, size = 0xc000, scoped, tag = 'input window, operand 5, single buffered']
    #allocation8 [shape = 'u8[16384]{0}', space=vmem, size = 0x4000, scoped, tag = 'output window, operand 0, single buffered']
    %14 = vsyncpa [#allocation3], 0
    %15 = vsyncpa [#allocation6], 0
    %16 = vsyncpa [#allocation4], 0
    // Predicated region
    $region2: #{enc_conv_block.1} parent=1 // pred_check
      _
    $region3: #{enc_conv_block.1} parent=1 // pred_check_branch
      %18 = sbr.rel (0) target = $region5
    $region4: #{enc_conv_block.1} parent=1 // pred_region
      %s20 = ssub.s32 512, 512
      %21 = vsyncadd [#allocation3], %s20
      %s22 = sshll.u32 [#allocation2], 4
      %s23 = int_to_ptr.vmem [resolvable:$true] %s22
      %28 = dma.hbm_to_vmem [thread:$0]  %s0, 512, %s23, [#allocation3], 128, 128, 8
    $region5: #{enc_conv_block.1} parent=1 // pred_fallthru
      _
    // Predicated region
    $region6: #{enc_conv_block.1} parent=1 // pred_check
      _
    $region7: #{enc_conv_block.1} parent=1 // pred_check_branch
      %30 = sbr.rel (0) target = $region9
    $region8: #{enc_conv_block.1} parent=1 // pred_region
      %s32 = ssub.s32 1536, 1536
      %33 = vsyncadd [#allocation6], %s32
      %s34 = sshll.u32 [#allocation5], 4
      %s35 = int_to_ptr.vmem [resolvable:$true] %s34
      %40 = dma.hbm_to_vmem [thread:$0]  %s1, 1536, %s35, [#allocation6], 128, 128, 8
    $region9: #{enc_conv_block.1} parent=1 // pred_fallthru
      _
    // Predicated region
    $region10: #{enc_conv_block.1} parent=1 // pred_check
      _
    $region11: #{enc_conv_block.1} parent=1 // pred_check_branch
      %42 = sbr.rel (0) target = $region13
    $region12: #{enc_conv_block.1} parent=1 // pred_region
      _
    $region13: #{enc_conv_block.1} parent=1 // pred_fallthru
      _
    // Predicated region
    $region14: #{enc_conv_block.1} parent=1 // pred_check
      _
    $region15: #{enc_conv_block.1} parent=1 // pred_check_branch
      %44 = sbr.rel (0) target = $region17
    $region16: #{enc_conv_block.1} parent=1 // pred_region
      _
    $region17: #{enc_conv_block.1} parent=1 // pred_fallthru
      _
    // Predicated region
    $region18: #{enc_conv_block.1} parent=1 // pred_check
      _
    $region19: #{enc_conv_block.1} parent=1 // pred_check_branch
      %46 = sbr.rel (0) target = $region21
    $region20: #{enc_conv_block.1} parent=1 // pred_region
      _
    $region21: #{enc_conv_block.1} parent=1 // pred_fallthru
      _
    // Predicated region
    $region22: #{enc_conv_block.1} parent=1 // pred_check
      _
    $region23: #{enc_conv_block.1} parent=1 // pred_check_branch
      %48 = sbr.rel (0) target = $region25
    $region24: #{enc_conv_block.1} parent=1 // pred_region
      %s50 = ssub.s32 1536, 1536
      %51 = vsyncadd [#allocation6], %s50
      %s52 = sshll.u32 [#allocation7], 4
      %s53 = int_to_ptr.vmem [resolvable:$true] %s52
      %58 = dma.hbm_to_vmem [thread:$0]  %s5, 1536, %s53, [#allocation6], 128, 128, 8
    $region25: #{enc_conv_block.1} parent=1 // pred_fallthru
      _
    // Predicated region
    $region26: #{enc_conv_block.1} parent=1 // pred_check
      _
    $region27: #{enc_conv_block.1} parent=1 // pred_check_branch
      %60 = sbr.rel (0) target = $region29
    $region28: #{enc_conv_block.1} parent=1 // pred_region
      _
    $region29: #{enc_conv_block.1} parent=1 // pred_fallthru
      _
    // Predicated region
    $region30: #{enc_conv_block.1} parent=1 // pred_check
      _
    $region31: #{enc_conv_block.1} parent=1 // pred_check_branch
      %62 = sbr.rel (0) target = $region33
    $region32: #{enc_conv_block.1} parent=1 // pred_region
      _
    $region33: #{enc_conv_block.1} parent=1 // pred_fallthru
      _
    // Predicated region
    $region34: #{enc_conv_block.1} parent=1 // pred_check
      _
    $region35: #{enc_conv_block.1} parent=1 // pred_check_branch
      %64 = sbr.rel (0) target = $region37
    $region36: #{enc_conv_block.1} parent=1 // pred_region
      _
    $region37: #{enc_conv_block.1} parent=1 // pred_fallthru
      _
    // Predicated region
    $region38: #{enc_conv_block.1} parent=1 // pred_check
      _
    $region39: #{enc_conv_block.1} parent=1 // pred_check_branch
      %66 = sbr.rel (0) target = $region41
    $region40: #{enc_conv_block.1} parent=1 // pred_region
      %67 = dma.done [#allocation3], 512
    $region41: #{enc_conv_block.1} parent=1 // pred_fallthru
      _
    // Predicated region
    $region42: #{enc_conv_block.1} parent=1 // pred_check
      _
    $region43: #{enc_conv_block.1} parent=1 // pred_check_branch
      %69 = sbr.rel (0) target = $region45
    $region44: #{enc_conv_block.1} parent=1 // pred_region
      %70 = dma.done [#allocation6], 1536
    $region45: #{enc_conv_block.1} parent=1 // pred_fallthru
      _
    // Predicated region
    $region46: #{enc_conv_block.1} parent=1 // pred_check
      _
    $region47: #{enc_conv_block.1} parent=1 // pred_check_branch
      %72 = sbr.rel (0) target = $region49
    $region48: #{enc_conv_block.1} parent=1 // pred_region
      %73 = dma.done [#allocation6], 1536
    $region49: #{enc_conv_block.1} parent=1 // pred_fallthru
      _
    %v74 = vlaneseq
    %v75 = vshrl.u32 %v74, 7
    %v76 = vadd.s32 %v75, 8
    %v77 = vadd.s32 %v75, 16
    %v78 = vadd.s32 %v75, 24
    %vm79 = vcmp.eq.s32.totalorder %v75, 0
    %vm80 = vcmp.eq.s32.totalorder %v76, 0
    %vm81 = vcmp.eq.s32.totalorder %v77, 0
    %vm82 = vcmp.eq.s32.totalorder %v78, 0
    %vm83 = vcmp.eq.s32.totalorder %v75, 16
    %vm84 = vcmp.eq.s32.totalorder %v76, 16
    %vm85 = vcmp.eq.s32.totalorder %v77, 16
    %vm86 = vcmp.eq.s32.totalorder %v78, 16
    %vm87 = vmor %vm79, %vm83
    %vm88 = vmor %vm80, %vm84
    %vm89 = vmor %vm81, %vm85
    %vm90 = vmor %vm82, %vm86
    %vm91 = vcmp.eq.s32.totalorder %v75, 15
    %vm92 = vcmp.eq.s32.totalorder %v76, 15
    %vm93 = vcmp.eq.s32.totalorder %v77, 15
    %vm94 = vcmp.eq.s32.totalorder %v78, 15
    %vm95 = vcmp.eq.s32.totalorder %v75, 31
    %vm96 = vcmp.eq.s32.totalorder %v76, 31
    %vm97 = vcmp.eq.s32.totalorder %v77, 31
    %vm98 = vcmp.eq.s32.totalorder %v78, 31
    %vm99 = vmor %vm91, %vm95
    %vm100 = vmor %vm92, %vm96
    %vm101 = vmor %vm93, %vm97
    %vm102 = vmor %vm94, %vm98
    %v103 = vld [vmem:[#allocation2] sm:$0xff]
    %v104 = vld [vmem:[#allocation2 + $0x8] sm:$0xff]
    %v105 = vld [vmem:[#allocation2 + $0x10] sm:$0xff]
    %v106 = vld [vmem:[#allocation2 + $0x18] sm:$0xff]
    %v107 = vrot.slane %v103, 1
    %v108 = vrot.slane %v104, 1
    %v109 = vrot.slane %v105, 1
    %v110 = vrot.slane %v106, 1
    %vm111 = vcmp.lt.s32.totalorder %v75, 7
    %v112 = vsel %vm111, %v109, %v110
    %v113 = vsel %vm111, %v108, %v109
    %v114 = vsel %vm111, %v107, %v108
    %v115 = vsel %vm111, %v110, %v107
    %v116 = vrot.slane %v103, 7
    %v117 = vrot.slane %v104, 7
    %v118 = vrot.slane %v105, 7
    %v119 = vrot.slane %v106, 7
    %vm120 = vcmp.lt.s32.totalorder %v75, 1
    %v121 = vsel %vm120, %v118, %v119
    %v122 = vsel %vm120, %v117, %v118
    %v123 = vsel %vm120, %v116, %v117
    %v124 = vsel %vm120, %v119, %v116
    %s125 = scalar_lea.vmem [#allocation5], 32
    %v126 = vld [vmem:[%s125] sm:$0xff]
    %v127 = vld [vmem:[%s125 + $0x8] sm:$0xff]
    %v128 = vld [vmem:[%s125 + $0x10] sm:$0xff]
    %v129 = vld [vmem:[%s125 + $0x18] sm:$0xff]
    %v130 = vsel %vm87, %v114, %v124
    %v131 = vsel %vm88, %v113, %v123
    %v132 = vsel %vm89, %v112, %v122
    %v133 = vsel %vm90, %v115, %v121
    %v134 = vld [vmem:[#allocation5] sm:$0xff]
    %v135 = vld [vmem:[#allocation5 + $0x8] sm:$0xff]
    %v136 = vld [vmem:[#allocation5 + $0x10] sm:$0xff]
    %v137 = vld [vmem:[#allocation5 + $0x18] sm:$0xff]
    %vm138 = vcmask 261120
    %v140 = vsel %vm138, %v130, 0
    %v143 = vsel %vm138, %v131, 0
    %v146 = vsel %vm138, %v132, 0
    %v149 = vsel %vm138, %v133, 0
    %151 = vmatprep.subr.mxu0 0.0
    %152 = vmatpush1.msra.mxu0 %v134
    %153 = vmatprep.subr.mxu0 0.0
    %154 = vmatpush1.msra.mxu0 %v135
    %155 = vmatprep.subr.mxu0 0.0
    %156 = vmatpush1.msra.mxu0 %v136
    %157 = vmatprep.subr.mxu0 0.0
    %158 = vmatpush1.msra.mxu0 %v137
    %159 = vmatprep.subr.mxu0 0.0
    %160 = vmatpush1.msra.mxu0 0.0
    %161 = vmatprep.subr.mxu0 0.0
    %162 = vmatpush1.msra.mxu0 0.0
    %163 = vmatprep.subr.mxu0 0.0
    %164 = vmatpush1.msra.mxu0 0.0
    %165 = vmatprep.subr.mxu0 0.0
    %166 = vmatpush1.msra.mxu0 0.0
    %167 = vmatprep.subr.mxu0 0.0
    %168 = vmatpush1.msra.mxu0 0.0
    %169 = vmatprep.subr.mxu0 0.0
    %170 = vmatpush1.msra.mxu0 0.0
    %171 = vmatprep.subr.mxu0 0.0
    %172 = vmatpush1.msra.mxu0 0.0
    %173 = vmatprep.subr.mxu0 0.0
    %174 = vmatpush1.msra.mxu0 0.0
    %175 = vmatprep.subr.mxu0 0.0
    %176 = vmatpush1.msra.mxu0 0.0
    %177 = vmatprep.subr.mxu0 0.0
    %178 = vmatpush1.msra.mxu0 0.0
    %179 = vmatprep.subr.mxu0 0.0
    %180 = vmatpush1.msra.mxu0 0.0
    %181 = vmatprep.subr.mxu0 0.0
    %182 = vmatpush1.msra.mxu0 0.0
    %183 = vmatprep.subr.mxu0 0.0
    %184 = vmatpush1.msra.mxu0 0.0
    %185 = vmatprep.subr.mxu0 0.0
    %186 = vmatpush1.msra.mxu0 0.0
    %187 = vmatprep.subr.mxu0 0.0
    %188 = vmatpush1.msra.mxu0 0.0
    %189 = vmatprep.subr.mxu0 0.0
    %190 = vmatpush1.msra.mxu0 0.0
    %191 = vmatprep.subr.mxu0 0.0
    %192 = vmatpush1.msra.mxu0 0.0
    %193 = vmatprep.subr.mxu0 0.0
    %194 = vmatpush1.msra.mxu0 0.0
    %195 = vmatprep.subr.mxu0 0.0
    %196 = vmatpush1.msra.mxu0 0.0
    %197 = vmatprep.subr.mxu0 0.0
    %198 = vmatpush1.msra.mxu0 0.0
    %199 = vmatprep.subr.mxu0 0.0
    %200 = vmatpush1.msra.mxu0 0.0
    %201 = vmatprep.subr.mxu0 0.0
    %202 = vmatpush1.msra.mxu0 0.0
    %203 = vmatprep.subr.mxu0 0.0
    %204 = vmatpush1.msra.mxu0 0.0
    %205 = vmatprep.subr.mxu0 0.0
    %206 = vmatpush1.msra.mxu0 0.0
    %207 = vmatprep.subr.mxu0 0.0
    %208 = vmatpush1.msra.mxu0 0.0
    %209 = vmatprep.subr.mxu0 0.0
    %210 = vmatpush1.msra.mxu0 0.0
    %211 = vmatprep.subr.mxu0 0.0
    %212 = vmatpush1.msra.mxu0 0.0
    %213 = vmatprep.subr.mxu0 0.0
    %214 = vmatpush1.msra.mxu0 0.0
    %215 = vmatprep.mubr.f32.mxu0 0.0
    %216 = vmatmul.mubr.f32.gmra.mrb[0].mxu0 %v140
    %v217 = vpop.f32.mrb[0].mxu0
    %v218 = vadd.f32 0.0, %v217
    %v219 = vpop.f32.mrb[0].mxu0
    %220 = vmatprep.mubr.f32.mxu0 0.0
    %221 = vmatmul.mubr.f32.gmra.mrb[0].mxu0 %v143
    %v222 = vpop.f32.mrb[0].mxu0
    %v223 = vadd.f32 0.0, %v222
    %v224 = vpop.f32.mrb[0].mxu0
    %225 = vmatprep.mubr.f32.mxu0 0.0
    %226 = vmatmul.mubr.f32.gmra.mrb[0].mxu0 %v146
    %v227 = vpop.f32.mrb[0].mxu0
    %v228 = vadd.f32 0.0, %v227
    %v229 = vpop.f32.mrb[0].mxu0
    %230 = vmatprep.mubr.f32.mxu0 0.0
    %231 = vmatmul.mubr.f32.gmra.mrb[0].mxu0 %v149
    %v232 = vpop.f32.mrb[0].mxu0
    %v233 = vadd.f32 0.0, %v232
    %v234 = vpop.f32.mrb[0].mxu0
    %235 = vdwg.mxu0
    %v237 = vsel %vm138, %v103, 0
    %v240 = vsel %vm138, %v104, 0
    %v243 = vsel %vm138, %v105, 0
    %v246 = vsel %vm138, %v106, 0
    %248 = vmatprep.subr.mxu0 0.0
    %249 = vmatpush1.msra.mxu0 %v126
    %250 = vmatprep.subr.mxu0 0.0
    %251 = vmatpush1.msra.mxu0 %v127
    %252 = vmatprep.subr.mxu0 0.0
    %253 = vmatpush1.msra.mxu0 %v128
    %254 = vmatprep.subr.mxu0 0.0
    %255 = vmatpush1.msra.mxu0 %v129
    %256 = vmatprep.subr.mxu0 0.0
    %257 = vmatpush1.msra.mxu0 0.0
    %258 = vmatprep.subr.mxu0 0.0
    %259 = vmatpush1.msra.mxu0 0.0
    %260 = vmatprep.subr.mxu0 0.0
    %261 = vmatpush1.msra.mxu0 0.0
    %262 = vmatprep.subr.mxu0 0.0
    %263 = vmatpush1.msra.mxu0 0.0
    %264 = vmatprep.subr.mxu0 0.0
    %265 = vmatpush1.msra.mxu0 0.0
    %266 = vmatprep.subr.mxu0 0.0
    %267 = vmatpush1.msra.mxu0 0.0
    %268 = vmatprep.subr.mxu0 0.0
    %269 = vmatpush1.msra.mxu0 0.0
    %270 = vmatprep.subr.mxu0 0.0
    %271 = vmatpush1.msra.mxu0 0.0
    %272 = vmatprep.subr.mxu0 0.0
    %273 = vmatpush1.msra.mxu0 0.0
    %274 = vmatprep.subr.mxu0 0.0
    %275 = vmatpush1.msra.mxu0 0.0
    %276 = vmatprep.subr.mxu0 0.0
    %277 = vmatpush1.msra.mxu0 0.0
    %278 = vmatprep.subr.mxu0 0.0
    %279 = vmatpush1.msra.mxu0 0.0
    %280 = vmatprep.subr.mxu0 0.0
    %281 = vmatpush1.msra.mxu0 0.0
    %282 = vmatprep.subr.mxu0 0.0
    %283 = vmatpush1.msra.mxu0 0.0
    %284 = vmatprep.subr.mxu0 0.0
    %285 = vmatpush1.msra.mxu0 0.0
    %286 = vmatprep.subr.mxu0 0.0
    %287 = vmatpush1.msra.mxu0 0.0
    %288 = vmatprep.subr.mxu0 0.0
    %289 = vmatpush1.msra.mxu0 0.0
    %290 = vmatprep.subr.mxu0 0.0
    %291 = vmatpush1.msra.mxu0 0.0
    %292 = vmatprep.subr.mxu0 0.0
    %293 = vmatpush1.msra.mxu0 0.0
    %294 = vmatprep.subr.mxu0 0.0
    %295 = vmatpush1.msra.mxu0 0.0
    %296 = vmatprep.subr.mxu0 0.0
    %297 = vmatpush1.msra.mxu0 0.0
    %298 = vmatprep.subr.mxu0 0.0
    %299 = vmatpush1.msra.mxu0 0.0
    %300 = vmatprep.subr.mxu0 0.0
    %301 = vmatpush1.msra.mxu0 0.0
    %302 = vmatprep.subr.mxu0 0.0
    %303 = vmatpush1.msra.mxu0 0.0
    %304 = vmatprep.subr.mxu0 0.0
    %305 = vmatpush1.msra.mxu0 0.0
    %306 = vmatprep.subr.mxu0 0.0
    %307 = vmatpush1.msra.mxu0 0.0
    %308 = vmatprep.subr.mxu0 0.0
    %309 = vmatpush1.msra.mxu0 0.0
    %310 = vmatprep.subr.mxu0 0.0
    %311 = vmatpush1.msra.mxu0 0.0
    %312 = vmatprep.mubr.f32.mxu0 0.0
    %313 = vmatmul.mubr.f32.gmra.mrb[0].mxu0 %v237
    %v314 = vpop.f32.mrb[0].mxu0
    %v315 = vadd.f32 %v218, %v314
    %v316 = vpop.f32.mrb[0].mxu0
    %317 = vmatprep.mubr.f32.mxu0 0.0
    %318 = vmatmul.mubr.f32.gmra.mrb[0].mxu0 %v240
    %v319 = vpop.f32.mrb[0].mxu0
    %v320 = vadd.f32 %v223, %v319
    %v321 = vpop.f32.mrb[0].mxu0
    %322 = vmatprep.mubr.f32.mxu0 0.0
    %323 = vmatmul.mubr.f32.gmra.mrb[0].mxu0 %v243
    %v324 = vpop.f32.mrb[0].mxu0
    %v325 = vadd.f32 %v228, %v324
    %v326 = vpop.f32.mrb[0].mxu0
    %327 = vmatprep.mubr.f32.mxu0 0.0
    %328 = vmatmul.mubr.f32.gmra.mrb[0].mxu0 %v246
    %v329 = vpop.f32.mrb[0].mxu0
    %v330 = vadd.f32 %v233, %v329
    %v331 = vpop.f32.mrb[0].mxu0
    %332 = vdwg.mxu0
    %v333 = vsel %vm99, %v124, %v114
    %v334 = vsel %vm100, %v123, %v113
    %v335 = vsel %vm101, %v122, %v112
    %v336 = vsel %vm102, %v121, %v115
    %s337 = scalar_lea.vmem [#allocation5], 64
    %v338 = vld [vmem:[%s337] sm:$0xff]
    %v339 = vld [vmem:[%s337 + $0x8] sm:$0xff]
    %v340 = vld [vmem:[%s337 + $0x10] sm:$0xff]
    %v341 = vld [vmem:[%s337 + $0x18] sm:$0xff]
    %v343 = vsel %vm138, %v333, 0
    %v346 = vsel %vm138, %v334, 0
    %v349 = vsel %vm138, %v335, 0
    %v352 = vsel %vm138, %v336, 0
    %354 = vmatprep.subr.mxu0 0.0
    %355 = vmatpush1.msra.mxu0 %v338
    %356 = vmatprep.subr.mxu0 0.0
    %357 = vmatpush1.msra.mxu0 %v339
    %358 = vmatprep.subr.mxu0 0.0
    %359 = vmatpush1.msra.mxu0 %v340
    %360 = vmatprep.subr.mxu0 0.0
    %361 = vmatpush1.msra.mxu0 %v341
    %362 = vmatprep.subr.mxu0 0.0
    %363 = vmatpush1.msra.mxu0 0.0
    %364 = vmatprep.subr.mxu0 0.0
    %365 = vmatpush1.msra.mxu0 0.0
    %366 = vmatprep.subr.mxu0 0.0
    %367 = vmatpush1.msra.mxu0 0.0
    %368 = vmatprep.subr.mxu0 0.0
    %369 = vmatpush1.msra.mxu0 0.0
    %370 = vmatprep.subr.mxu0 0.0
    %371 = vmatpush1.msra.mxu0 0.0
    %372 = vmatprep.subr.mxu0 0.0
    %373 = vmatpush1.msra.mxu0 0.0
    %374 = vmatprep.subr.mxu0 0.0
    %375 = vmatpush1.msra.mxu0 0.0
    %376 = vmatprep.subr.mxu0 0.0
    %377 = vmatpush1.msra.mxu0 0.0
    %378 = vmatprep.subr.mxu0 0.0
    %379 = vmatpush1.msra.mxu0 0.0
    %380 = vmatprep.subr.mxu0 0.0
    %381 = vmatpush1.msra.mxu0 0.0
    %382 = vmatprep.subr.mxu0 0.0
    %383 = vmatpush1.msra.mxu0 0.0
    %384 = vmatprep.subr.mxu0 0.0
    %385 = vmatpush1.msra.mxu0 0.0
    %386 = vmatprep.subr.mxu0 0.0
    %387 = vmatpush1.msra.mxu0 0.0
    %388 = vmatprep.subr.mxu0 0.0
    %389 = vmatpush1.msra.mxu0 0.0
    %390 = vmatprep.subr.mxu0 0.0
    %391 = vmatpush1.msra.mxu0 0.0
    %392 = vmatprep.subr.mxu0 0.0
    %393 = vmatpush1.msra.mxu0 0.0
    %394 = vmatprep.subr.mxu0 0.0
    %395 = vmatpush1.msra.mxu0 0.0
    %396 = vmatprep.subr.mxu0 0.0
    %397 = vmatpush1.msra.mxu0 0.0
    %398 = vmatprep.subr.mxu0 0.0
    %399 = vmatpush1.msra.mxu0 0.0
    %400 = vmatprep.subr.mxu0 0.0
    %401 = vmatpush1.msra.mxu0 0.0
    %402 = vmatprep.subr.mxu0 0.0
    %403 = vmatpush1.msra.mxu0 0.0
    %404 = vmatprep.subr.mxu0 0.0
    %405 = vmatpush1.msra.mxu0 0.0
    %406 = vmatprep.subr.mxu0 0.0
    %407 = vmatpush1.msra.mxu0 0.0
    %408 = vmatprep.subr.mxu0 0.0
    %409 = vmatpush1.msra.mxu0 0.0
    %410 = vmatprep.subr.mxu0 0.0
    %411 = vmatpush1.msra.mxu0 0.0
    %412 = vmatprep.subr.mxu0 0.0
    %413 = vmatpush1.msra.mxu0 0.0
    %414 = vmatprep.subr.mxu0 0.0
    %415 = vmatpush1.msra.mxu0 0.0
    %416 = vmatprep.subr.mxu0 0.0
    %417 = vmatpush1.msra.mxu0 0.0
    %418 = vmatprep.mubr.f32.mxu0 0.0
    %419 = vmatmul.mubr.f32.gmra.mrb[0].mxu0 %v343
    %v420 = vpop.f32.mrb[0].mxu0
    %v421 = vadd.f32 0.0, %v420
    %v422 = vpop.f32.mrb[0].mxu0
    %423 = vmatprep.mubr.f32.mxu0 0.0
    %424 = vmatmul.mubr.f32.gmra.mrb[0].mxu0 %v346
    %v425 = vpop.f32.mrb[0].mxu0
    %v426 = vadd.f32 0.0, %v425
    %v427 = vpop.f32.mrb[0].mxu0
    %428 = vmatprep.mubr.f32.mxu0 0.0
    %429 = vmatmul.mubr.f32.gmra.mrb[0].mxu0 %v349
    %v430 = vpop.f32.mrb[0].mxu0
    %v431 = vadd.f32 0.0, %v430
    %v432 = vpop.f32.mrb[0].mxu0
    %433 = vmatprep.mubr.f32.mxu0 0.0
    %434 = vmatmul.mubr.f32.gmra.mrb[0].mxu0 %v352
    %v435 = vpop.f32.mrb[0].mxu0
    %v436 = vadd.f32 0.0, %v435
    %v437 = vpop.f32.mrb[0].mxu0
    %438 = vdwg.mxu0
    %v439 = vadd.f32 %v315, %v421
    %v440 = vadd.f32 %v320, %v426
    %v441 = vadd.f32 %v325, %v431
    %v442 = vadd.f32 %v330, %v436
    %v443 = vld [vmem:[%s2] sm:$0x1]
    %v445 = vlaneseq
    %v446 = vshrl.u32 %v445, 7
    %v447 = vsub.s32 0, %v446
    %v448 = vrot.slane %v443, %v447
    %v450 = vadd.f32 %v439, %v448
    %v451 = vadd.f32 %v440, %v448
    %v452 = vadd.f32 %v441, %v448
    %v453 = vadd.f32 %v442, %v448
    %v454 = vld [vmem:[%s3] sm:$0x1]
    %v455 = vld [vmem:[%s4] sm:$0x1]
    %v456 = vsel %vm138, %v450, 0.0
    %457 = vadd.xlane.f32.xlu0 %v456
    %v458 = vpop.xlane.xlu0 %457
    %v459 = vsel %vm138, %v451, 0.0
    %460 = vadd.xlane.f32.xlu0 %v459
    %v461 = vpop.xlane.xlu0 %460
    %v462 = vsel %vm138, %v452, 0.0
    %463 = vadd.xlane.f32.xlu0 %v462
    %v464 = vpop.xlane.xlu0 %463
    %v465 = vsel %vm138, %v453, 0.0
    %466 = vadd.xlane.f32.xlu0 %v465
    %v467 = vpop.xlane.xlu0 %466
    %v468 = vrcp.pop 32.0
    %v469 = vmul.f32 %v458, %v468
    %v470 = vmul.f32 %v461, %v468
    %v471 = vmul.f32 %v464, %v468
    %v472 = vmul.f32 %v467, %v468
    %v473 = vmul.f32 %v450, %v450
    %v474 = vmul.f32 %v451, %v451
    %v475 = vmul.f32 %v452, %v452
    %v476 = vmul.f32 %v453, %v453
    %v477 = vsel %vm138, %v473, 0.0
    %478 = vadd.xlane.f32.xlu0 %v477
    %v479 = vpop.xlane.xlu0 %478
    %v480 = vsel %vm138, %v474, 0.0
    %481 = vadd.xlane.f32.xlu0 %v480
    %v482 = vpop.xlane.xlu0 %481
    %v483 = vsel %vm138, %v475, 0.0
    %484 = vadd.xlane.f32.xlu0 %v483
    %v485 = vpop.xlane.xlu0 %484
    %v486 = vsel %vm138, %v476, 0.0
    %487 = vadd.xlane.f32.xlu0 %v486
    %v488 = vpop.xlane.xlu0 %487
    %v489 = vmul.f32 %v479, %v468
    %v490 = vmul.f32 %v482, %v468
    %v491 = vmul.f32 %v485, %v468
    %v492 = vmul.f32 %v488, %v468
    %v493 = vmul.f32 %v469, %v469
    %v494 = vmul.f32 %v470, %v470
    %v495 = vmul.f32 %v471, %v471
    %v496 = vmul.f32 %v472, %v472
    %v497 = vsub.f32 %v489, %v493
    %v498 = vsub.f32 %v490, %v494
    %v499 = vsub.f32 %v491, %v495
    %v500 = vsub.f32 %v492, %v496
    %v501 = vmax.f32 %v497, 0.0
    %v502 = vmax.f32 %v498, 0.0
    %v503 = vmax.f32 %v499, 0.0
    %v504 = vmax.f32 %v500, 0.0
    %v505 = vsub.f32 %v450, %v469
    %v506 = vsub.f32 %v451, %v470
    %v507 = vsub.f32 %v452, %v471
    %v508 = vsub.f32 %v453, %v472
    %v509 = vadd.f32 %v501, 1e-05
    %v510 = vadd.f32 %v502, 1e-05
    %v511 = vadd.f32 %v503, 1e-05
    %v512 = vadd.f32 %v504, 1e-05
    %v513 = vrsqrt.pop %v509
    %v514 = vrsqrt.pop %v510
    %v515 = vrsqrt.pop %v511
    %v516 = vrsqrt.pop %v512
    %v517 = vmul.f32 %v505, %v513
    %v518 = vmul.f32 %v506, %v514
    %v519 = vmul.f32 %v507, %v515
    %v520 = vmul.f32 %v508, %v516
    %v522 = vlaneseq
    %v523 = vshrl.u32 %v522, 7
    %v524 = vsub.s32 0, %v523
    %v525 = vrot.slane %v454, %v524
    %v527 = vmul.f32 %v517, %v525
    %v528 = vmul.f32 %v518, %v525
    %v529 = vmul.f32 %v519, %v525
    %v530 = vmul.f32 %v520, %v525
    %v532 = vlaneseq
    %v533 = vshrl.u32 %v532, 7
    %v534 = vsub.s32 0, %v533
    %v535 = vrot.slane %v455, %v534
    %v537 = vadd.f32 %v527, %v535
    %v538 = vadd.f32 %v528, %v535
    %v539 = vadd.f32 %v529, %v535
    %v540 = vadd.f32 %v530, %v535
    %v541 = vmul.f32 %v537, 0.5
    %v542 = vmul.f32 %v538, 0.5
    %v543 = vmul.f32 %v539, 0.5
    %v544 = vmul.f32 %v540, 0.5
    %v545 = vmul.f32 %v537, 0.70710677
    %v546 = vmul.f32 %v538, 0.70710677
    %v547 = vmul.f32 %v539, 0.70710677
    %v548 = vmul.f32 %v540, 0.70710677
    %vm549 = vcmp.ge.f32.partialorder %v545, 0.0
    %vm550 = vcmp.ge.f32.partialorder %v546, 0.0
    %vm551 = vcmp.ge.f32.partialorder %v547, 0.0
    %vm552 = vcmp.ge.f32.partialorder %v548, 0.0
    %v553 = vsel %vm549, 1.0, -1.0
    %v554 = vsel %vm550, 1.0, -1.0
    %v555 = vsel %vm551, 1.0, -1.0
    %v556 = vsel %vm552, 1.0, -1.0
    %v557 = vand.u32 2147483647, %v545
    %v558 = vand.u32 2147483647, %v546
    %v559 = vand.u32 2147483647, %v547
    %v560 = vand.u32 2147483647, %v548
    %v561 = vmul.f32 %v557, 0.3275911
    %v562 = vmul.f32 %v558, 0.3275911
    %v563 = vmul.f32 %v559, 0.3275911
    %v564 = vmul.f32 %v560, 0.3275911
    %v565 = vadd.f32 %v561, 1.0
    %v566 = vadd.f32 %v562, 1.0
    %v567 = vadd.f32 %v563, 1.0
    %v568 = vadd.f32 %v564, 1.0
    %v569 = vrcp.pop %v565
    %v570 = vrcp.pop %v566
    %v571 = vrcp.pop %v567
    %v572 = vrcp.pop %v568
    %v573 = vmul.f32 %v569, 1.0614054
    %v574 = vmul.f32 %v570, 1.0614054
    %v575 = vmul.f32 %v571, 1.0614054
    %v576 = vmul.f32 %v572, 1.0614054
    %v577 = vadd.f32 %v573, -1.4531521
    %v578 = vadd.f32 %v574, -1.4531521
    %v579 = vadd.f32 %v575, -1.4531521
    %v580 = vadd.f32 %v576, -1.4531521
    %v581 = vmul.f32 %v577, %v569
    %v582 = vmul.f32 %v578, %v570
    %v583 = vmul.f32 %v579, %v571
    %v584 = vmul.f32 %v580, %v572
    %v585 = vadd.f32 %v581, 1.4214138
    %v586 = vadd.f32 %v582, 1.4214138
    %v587 = vadd.f32 %v583, 1.4214138
    %v588 = vadd.f32 %v584, 1.4214138
    %v589 = vmul.f32 %v585, %v569
    %v590 = vmul.f32 %v586, %v570
    %v591 = vmul.f32 %v587, %v571
    %v592 = vmul.f32 %v588, %v572
    %v593 = vadd.f32 %v589, -0.28449672
    %v594 = vadd.f32 %v590, -0.28449672
    %v595 = vadd.f32 %v591, -0.28449672
    %v596 = vadd.f32 %v592, -0.28449672
    %v597 = vmul.f32 %v593, %v569
    %v598 = vmul.f32 %v594, %v570
    %v599 = vmul.f32 %v595, %v571
    %v600 = vmul.f32 %v596, %v572
    %v601 = vadd.f32 %v597, 0.2548296
    %v602 = vadd.f32 %v598, 0.2548296
    %v603 = vadd.f32 %v599, 0.2548296
    %v604 = vadd.f32 %v600, 0.2548296
    %v605 = vmul.f32 %v601, %v569
    %v606 = vmul.f32 %v602, %v570
    %v607 = vmul.f32 %v603, %v571
    %v608 = vmul.f32 %v604, %v572
    %v609 = vsub.f32 0.0, %v557
    %v610 = vsub.f32 0.0, %v558
    %v611 = vsub.f32 0.0, %v559
    %v612 = vsub.f32 0.0, %v560
    %v613 = vmul.f32 %v609, %v557
    %v614 = vmul.f32 %v610, %v558
    %v615 = vmul.f32 %v611, %v559
    %v616 = vmul.f32 %v612, %v560
    %v617 = vmul.f32 %v613, 1.442695
    %v618 = vpow.pop %v617
    %v619 = vmul.f32 %v614, 1.442695
    %v620 = vpow.pop %v619
    %v621 = vmul.f32 %v615, 1.442695
    %v622 = vpow.pop %v621
    %v623 = vmul.f32 %v616, 1.442695
    %v624 = vpow.pop %v623
    %v625 = vmul.f32 %v605, %v618
    %v626 = vmul.f32 %v606, %v620
    %v627 = vmul.f32 %v607, %v622
    %v628 = vmul.f32 %v608, %v624
    %v629 = vsub.f32 1.0, %v625
    %v630 = vsub.f32 1.0, %v626
    %v631 = vsub.f32 1.0, %v627
    %v632 = vsub.f32 1.0, %v628
    %v633 = vmul.f32 %v553, %v629
    %v634 = vmul.f32 %v554, %v630
    %v635 = vmul.f32 %v555, %v631
    %v636 = vmul.f32 %v556, %v632
    %v637 = vadd.f32 %v633, 1.0
    %v638 = vadd.f32 %v634, 1.0
    %v639 = vadd.f32 %v635, 1.0
    %v640 = vadd.f32 %v636, 1.0
    %v641 = vmul.f32 %v541, %v637
    %v642 = vmul.f32 %v542, %v638
    %v643 = vmul.f32 %v543, %v639
    %v644 = vmul.f32 %v544, %v640
    %v645 = vrot.slane %v641, 1
    %v646 = vrot.slane %v642, 1
    %v647 = vrot.slane %v643, 1
    %v648 = vrot.slane %v644, 1
    %v649 = vsel %vm111, %v647, %v648
    %v650 = vsel %vm111, %v646, %v647
    %v651 = vsel %vm111, %v645, %v646
    %v652 = vsel %vm111, %v648, %v645
    %v653 = vrot.slane %v641, 7
    %v654 = vrot.slane %v642, 7
    %v655 = vrot.slane %v643, 7
    %v656 = vrot.slane %v644, 7
    %v657 = vsel %vm120, %v655, %v656
    %v658 = vsel %vm120, %v654, %v655
    %v659 = vsel %vm120, %v653, %v654
    %v660 = vsel %vm120, %v656, %v653
    %s661 = scalar_lea.vmem [#allocation7], 32
    %v662 = vld [vmem:[%s661] sm:$0xff]
    %v663 = vld [vmem:[%s661 + $0x8] sm:$0xff]
    %v664 = vld [vmem:[%s661 + $0x10] sm:$0xff]
    %v665 = vld [vmem:[%s661 + $0x18] sm:$0xff]
    %v666 = vsel %vm87, %v651, %v660
    %v667 = vsel %vm88, %v650, %v659
    %v668 = vsel %vm89, %v649, %v658
    %v669 = vsel %vm90, %v652, %v657
    %v670 = vld [vmem:[#allocation7] sm:$0xff]
    %v671 = vld [vmem:[#allocation7 + $0x8] sm:$0xff]
    %v672 = vld [vmem:[#allocation7 + $0x10] sm:$0xff]
    %v673 = vld [vmem:[#allocation7 + $0x18] sm:$0xff]
    %v675 = vsel %vm138, %v666, 0
    %v678 = vsel %vm138, %v667, 0
    %v681 = vsel %vm138, %v668, 0
    %v684 = vsel %vm138, %v669, 0
    %686 = vmatprep.subr.mxu0 0.0
    %687 = vmatpush1.msra.mxu0 %v670
    %688 = vmatprep.subr.mxu0 0.0
    %689 = vmatpush1.msra.mxu0 %v671
    %690 = vmatprep.subr.mxu0 0.0
    %691 = vmatpush1.msra.mxu0 %v672
    %692 = vmatprep.subr.mxu0 0.0
    %693 = vmatpush1.msra.mxu0 %v673
    %694 = vmatprep.subr.mxu0 0.0
    %695 = vmatpush1.msra.mxu0 0.0
    %696 = vmatprep.subr.mxu0 0.0
    %697 = vmatpush1.msra.mxu0 0.0
    %698 = vmatprep.subr.mxu0 0.0
    %699 = vmatpush1.msra.mxu0 0.0
    %700 = vmatprep.subr.mxu0 0.0
    %701 = vmatpush1.msra.mxu0 0.0
    %702 = vmatprep.subr.mxu0 0.0
    %703 = vmatpush1.msra.mxu0 0.0
    %704 = vmatprep.subr.mxu0 0.0
    %705 = vmatpush1.msra.mxu0 0.0
    %706 = vmatprep.subr.mxu0 0.0
    %707 = vmatpush1.msra.mxu0 0.0
    %708 = vmatprep.subr.mxu0 0.0
    %709 = vmatpush1.msra.mxu0 0.0
    %710 = vmatprep.subr.mxu0 0.0
    %711 = vmatpush1.msra.mxu0 0.0
    %712 = vmatprep.subr.mxu0 0.0
    %713 = vmatpush1.msra.mxu0 0.0
    %714 = vmatprep.subr.mxu0 0.0
    %715 = vmatpush1.msra.mxu0 0.0
    %716 = vmatprep.subr.mxu0 0.0
    %717 = vmatpush1.msra.mxu0 0.0
    %718 = vmatprep.subr.mxu0 0.0
    %719 = vmatpush1.msra.mxu0 0.0
    %720 = vmatprep.subr.mxu0 0.0
    %721 = vmatpush1.msra.mxu0 0.0
    %722 = vmatprep.subr.mxu0 0.0
    %723 = vmatpush1.msra.mxu0 0.0
    %724 = vmatprep.subr.mxu0 0.0
    %725 = vmatpush1.msra.mxu0 0.0
    %726 = vmatprep.subr.mxu0 0.0
    %727 = vmatpush1.msra.mxu0 0.0
    %728 = vmatprep.subr.mxu0 0.0
    %729 = vmatpush1.msra.mxu0 0.0
    %730 = vmatprep.subr.mxu0 0.0
    %731 = vmatpush1.msra.mxu0 0.0
    %732 = vmatprep.subr.mxu0 0.0
    %733 = vmatpush1.msra.mxu0 0.0
    %734 = vmatprep.subr.mxu0 0.0
    %735 = vmatpush1.msra.mxu0 0.0
    %736 = vmatprep.subr.mxu0 0.0
    %737 = vmatpush1.msra.mxu0 0.0
    %738 = vmatprep.subr.mxu0 0.0
    %739 = vmatpush1.msra.mxu0 0.0
    %740 = vmatprep.subr.mxu0 0.0
    %741 = vmatpush1.msra.mxu0 0.0
    %742 = vmatprep.subr.mxu0 0.0
    %743 = vmatpush1.msra.mxu0 0.0
    %744 = vmatprep.subr.mxu0 0.0
    %745 = vmatpush1.msra.mxu0 0.0
    %746 = vmatprep.subr.mxu0 0.0
    %747 = vmatpush1.msra.mxu0 0.0
    %748 = vmatprep.subr.mxu0 0.0
    %749 = vmatpush1.msra.mxu0 0.0
    %750 = vmatprep.mubr.f32.mxu0 0.0
    %751 = vmatmul.mubr.f32.gmra.mrb[0].mxu0 %v675
    %v752 = vpop.f32.mrb[0].mxu0
    %v753 = vadd.f32 0.0, %v752
    %v754 = vpop.f32.mrb[0].mxu0
    %755 = vmatprep.mubr.f32.mxu0 0.0
    %756 = vmatmul.mubr.f32.gmra.mrb[0].mxu0 %v678
    %v757 = vpop.f32.mrb[0].mxu0
    %v758 = vadd.f32 0.0, %v757
    %v759 = vpop.f32.mrb[0].mxu0
    %760 = vmatprep.mubr.f32.mxu0 0.0
    %761 = vmatmul.mubr.f32.gmra.mrb[0].mxu0 %v681
    %v762 = vpop.f32.mrb[0].mxu0
    %v763 = vadd.f32 0.0, %v762
    %v764 = vpop.f32.mrb[0].mxu0
    %765 = vmatprep.mubr.f32.mxu0 0.0
    %766 = vmatmul.mubr.f32.gmra.mrb[0].mxu0 %v684
    %v767 = vpop.f32.mrb[0].mxu0
    %v768 = vadd.f32 0.0, %v767
    %v769 = vpop.f32.mrb[0].mxu0
    %770 = vdwg.mxu0
    %v772 = vsel %vm138, %v641, 0
    %v775 = vsel %vm138, %v642, 0
    %v778 = vsel %vm138, %v643, 0
    %v781 = vsel %vm138, %v644, 0
    %783 = vmatprep.subr.mxu0 0.0
    %784 = vmatpush1.msra.mxu0 %v662
    %785 = vmatprep.subr.mxu0 0.0
    %786 = vmatpush1.msra.mxu0 %v663
    %787 = vmatprep.subr.mxu0 0.0
    %788 = vmatpush1.msra.mxu0 %v664
    %789 = vmatprep.subr.mxu0 0.0
    %790 = vmatpush1.msra.mxu0 %v665
    %791 = vmatprep.subr.mxu0 0.0
    %792 = vmatpush1.msra.mxu0 0.0
    %793 = vmatprep.subr.mxu0 0.0
    %794 = vmatpush1.msra.mxu0 0.0
    %795 = vmatprep.subr.mxu0 0.0
    %796 = vmatpush1.msra.mxu0 0.0
    %797 = vmatprep.subr.mxu0 0.0
    %798 = vmatpush1.msra.mxu0 0.0
    %799 = vmatprep.subr.mxu0 0.0
    %800 = vmatpush1.msra.mxu0 0.0
    %801 = vmatprep.subr.mxu0 0.0
    %802 = vmatpush1.msra.mxu0 0.0
    %803 = vmatprep.subr.mxu0 0.0
    %804 = vmatpush1.msra.mxu0 0.0
    %805 = vmatprep.subr.mxu0 0.0
    %806 = vmatpush1.msra.mxu0 0.0
    %807 = vmatprep.subr.mxu0 0.0
    %808 = vmatpush1.msra.mxu0 0.0
    %809 = vmatprep.subr.mxu0 0.0
    %810 = vmatpush1.msra.mxu0 0.0
    %811 = vmatprep.subr.mxu0 0.0
    %812 = vmatpush1.msra.mxu0 0.0
    %813 = vmatprep.subr.mxu0 0.0
    %814 = vmatpush1.msra.mxu0 0.0
    %815 = vmatprep.subr.mxu0 0.0
    %816 = vmatpush1.msra.mxu0 0.0
    %817 = vmatprep.subr.mxu0 0.0
    %818 = vmatpush1.msra.mxu0 0.0
    %819 = vmatprep.subr.mxu0 0.0
    %820 = vmatpush1.msra.mxu0 0.0
    %821 = vmatprep.subr.mxu0 0.0
    %822 = vmatpush1.msra.mxu0 0.0
    %823 = vmatprep.subr.mxu0 0.0
    %824 = vmatpush1.msra.mxu0 0.0
    %825 = vmatprep.subr.mxu0 0.0
    %826 = vmatpush1.msra.mxu0 0.0
    %827 = vmatprep.subr.mxu0 0.0
    %828 = vmatpush1.msra.mxu0 0.0
    %829 = vmatprep.subr.mxu0 0.0
    %830 = vmatpush1.msra.mxu0 0.0
    %831 = vmatprep.subr.mxu0 0.0
    %832 = vmatpush1.msra.mxu0 0.0
    %833 = vmatprep.subr.mxu0 0.0
    %834 = vmatpush1.msra.mxu0 0.0
    %835 = vmatprep.subr.mxu0 0.0
    %836 = vmatpush1.msra.mxu0 0.0
    %837 = vmatprep.subr.mxu0 0.0
    %838 = vmatpush1.msra.mxu0 0.0
    %839 = vmatprep.subr.mxu0 0.0
    %840 = vmatpush1.msra.mxu0 0.0
    %841 = vmatprep.subr.mxu0 0.0
    %842 = vmatpush1.msra.mxu0 0.0
    %843 = vmatprep.subr.mxu0 0.0
    %844 = vmatpush1.msra.mxu0 0.0
    %845 = vmatprep.subr.mxu0 0.0
    %846 = vmatpush1.msra.mxu0 0.0
    %847 = vmatprep.mubr.f32.mxu0 0.0
    %848 = vmatmul.mubr.f32.gmra.mrb[0].mxu0 %v772
    %v849 = vpop.f32.mrb[0].mxu0
    %v850 = vadd.f32 %v753, %v849
    %v851 = vpop.f32.mrb[0].mxu0
    %852 = vmatprep.mubr.f32.mxu0 0.0
    %853 = vmatmul.mubr.f32.gmra.mrb[0].mxu0 %v775
    %v854 = vpop.f32.mrb[0].mxu0
    %v855 = vadd.f32 %v758, %v854
    %v856 = vpop.f32.mrb[0].mxu0
    %857 = vmatprep.mubr.f32.mxu0 0.0
    %858 = vmatmul.mubr.f32.gmra.mrb[0].mxu0 %v778
    %v859 = vpop.f32.mrb[0].mxu0
    %v860 = vadd.f32 %v763, %v859
    %v861 = vpop.f32.mrb[0].mxu0
    %862 = vmatprep.mubr.f32.mxu0 0.0
    %863 = vmatmul.mubr.f32.gmra.mrb[0].mxu0 %v781
    %v864 = vpop.f32.mrb[0].mxu0
    %v865 = vadd.f32 %v768, %v864
    %v866 = vpop.f32.mrb[0].mxu0
    %867 = vdwg.mxu0
    %v868 = vsel %vm99, %v660, %v651
    %v869 = vsel %vm100, %v659, %v650
    %v870 = vsel %vm101, %v658, %v649
    %v871 = vsel %vm102, %v657, %v652
    %s872 = scalar_lea.vmem [#allocation7], 64
    %v873 = vld [vmem:[%s872] sm:$0xff]
    %v874 = vld [vmem:[%s872 + $0x8] sm:$0xff]
    %v875 = vld [vmem:[%s872 + $0x10] sm:$0xff]
    %v876 = vld [vmem:[%s872 + $0x18] sm:$0xff]
    %v878 = vsel %vm138, %v868, 0
    %v881 = vsel %vm138, %v869, 0
    %v884 = vsel %vm138, %v870, 0
    %v887 = vsel %vm138, %v871, 0
    %889 = vmatprep.subr.mxu0 0.0
    %890 = vmatpush1.msra.mxu0 %v873
    %891 = vmatprep.subr.mxu0 0.0
    %892 = vmatpush1.msra.mxu0 %v874
    %893 = vmatprep.subr.mxu0 0.0
    %894 = vmatpush1.msra.mxu0 %v875
    %895 = vmatprep.subr.mxu0 0.0
    %896 = vmatpush1.msra.mxu0 %v876
    %897 = vmatprep.subr.mxu0 0.0
    %898 = vmatpush1.msra.mxu0 0.0
    %899 = vmatprep.subr.mxu0 0.0
    %900 = vmatpush1.msra.mxu0 0.0
    %901 = vmatprep.subr.mxu0 0.0
    %902 = vmatpush1.msra.mxu0 0.0
    %903 = vmatprep.subr.mxu0 0.0
    %904 = vmatpush1.msra.mxu0 0.0
    %905 = vmatprep.subr.mxu0 0.0
    %906 = vmatpush1.msra.mxu0 0.0
    %907 = vmatprep.subr.mxu0 0.0
    %908 = vmatpush1.msra.mxu0 0.0
    %909 = vmatprep.subr.mxu0 0.0
    %910 = vmatpush1.msra.mxu0 0.0
    %911 = vmatprep.subr.mxu0 0.0
    %912 = vmatpush1.msra.mxu0 0.0
    %913 = vmatprep.subr.mxu0 0.0
    %914 = vmatpush1.msra.mxu0 0.0
    %915 = vmatprep.subr.mxu0 0.0
    %916 = vmatpush1.msra.mxu0 0.0
    %917 = vmatprep.subr.mxu0 0.0
    %918 = vmatpush1.msra.mxu0 0.0
    %919 = vmatprep.subr.mxu0 0.0
    %920 = vmatpush1.msra.mxu0 0.0
    %921 = vmatprep.subr.mxu0 0.0
    %922 = vmatpush1.msra.mxu0 0.0
    %923 = vmatprep.subr.mxu0 0.0
    %924 = vmatpush1.msra.mxu0 0.0
    %925 = vmatprep.subr.mxu0 0.0
    %926 = vmatpush1.msra.mxu0 0.0
    %927 = vmatprep.subr.mxu0 0.0
    %928 = vmatpush1.msra.mxu0 0.0
    %929 = vmatprep.subr.mxu0 0.0
    %930 = vmatpush1.msra.mxu0 0.0
    %931 = vmatprep.subr.mxu0 0.0
    %932 = vmatpush1.msra.mxu0 0.0
    %933 = vmatprep.subr.mxu0 0.0
    %934 = vmatpush1.msra.mxu0 0.0
    %935 = vmatprep.subr.mxu0 0.0
    %936 = vmatpush1.msra.mxu0 0.0
    %937 = vmatprep.subr.mxu0 0.0
    %938 = vmatpush1.msra.mxu0 0.0
    %939 = vmatprep.subr.mxu0 0.0
    %940 = vmatpush1.msra.mxu0 0.0
    %941 = vmatprep.subr.mxu0 0.0
    %942 = vmatpush1.msra.mxu0 0.0
    %943 = vmatprep.subr.mxu0 0.0
    %944 = vmatpush1.msra.mxu0 0.0
    %945 = vmatprep.subr.mxu0 0.0
    %946 = vmatpush1.msra.mxu0 0.0
    %947 = vmatprep.subr.mxu0 0.0
    %948 = vmatpush1.msra.mxu0 0.0
    %949 = vmatprep.subr.mxu0 0.0
    %950 = vmatpush1.msra.mxu0 0.0
    %951 = vmatprep.subr.mxu0 0.0
    %952 = vmatpush1.msra.mxu0 0.0
    %953 = vmatprep.mubr.f32.mxu0 0.0
    %954 = vmatmul.mubr.f32.gmra.mrb[0].mxu0 %v878
    %v955 = vpop.f32.mrb[0].mxu0
    %v956 = vadd.f32 0.0, %v955
    %v957 = vpop.f32.mrb[0].mxu0
    %958 = vmatprep.mubr.f32.mxu0 0.0
    %959 = vmatmul.mubr.f32.gmra.mrb[0].mxu0 %v881
    %v960 = vpop.f32.mrb[0].mxu0
    %v961 = vadd.f32 0.0, %v960
    %v962 = vpop.f32.mrb[0].mxu0
    %963 = vmatprep.mubr.f32.mxu0 0.0
    %964 = vmatmul.mubr.f32.gmra.mrb[0].mxu0 %v884
    %v965 = vpop.f32.mrb[0].mxu0
    %v966 = vadd.f32 0.0, %v965
    %v967 = vpop.f32.mrb[0].mxu0
    %968 = vmatprep.mubr.f32.mxu0 0.0
    %969 = vmatmul.mubr.f32.gmra.mrb[0].mxu0 %v887
    %v970 = vpop.f32.mrb[0].mxu0
    %v971 = vadd.f32 0.0, %v970
    %v972 = vpop.f32.mrb[0].mxu0
    %973 = vdwg.mxu0
    %v974 = vadd.f32 %v850, %v956
    %v975 = vadd.f32 %v855, %v961
    %v976 = vadd.f32 %v860, %v966
    %v977 = vadd.f32 %v865, %v971
    %v978 = vld [vmem:[%s6] sm:$0x1]
    %v980 = vlaneseq
    %v981 = vshrl.u32 %v980, 7
    %v982 = vsub.s32 0, %v981
    %v983 = vrot.slane %v978, %v982
    %v985 = vadd.f32 %v974, %v983
    %v986 = vadd.f32 %v975, %v983
    %v987 = vadd.f32 %v976, %v983
    %v988 = vadd.f32 %v977, %v983
    %v989 = vld [vmem:[%s7] sm:$0x1]
    %v990 = vld [vmem:[%s8] sm:$0x1]
    %v991 = vsel %vm138, %v985, 0.0
    %992 = vadd.xlane.f32.xlu0 %v991
    %v993 = vpop.xlane.xlu0 %992
    %v994 = vsel %vm138, %v986, 0.0
    %995 = vadd.xlane.f32.xlu0 %v994
    %v996 = vpop.xlane.xlu0 %995
    %v997 = vsel %vm138, %v987, 0.0
    %998 = vadd.xlane.f32.xlu0 %v997
    %v999 = vpop.xlane.xlu0 %998
    %v1000 = vsel %vm138, %v988, 0.0
    %1001 = vadd.xlane.f32.xlu0 %v1000
    %v1002 = vpop.xlane.xlu0 %1001
    %v1003 = vmul.f32 %v993, %v468
    %v1004 = vmul.f32 %v996, %v468
    %v1005 = vmul.f32 %v999, %v468
    %v1006 = vmul.f32 %v1002, %v468
    %v1007 = vmul.f32 %v985, %v985
    %v1008 = vmul.f32 %v986, %v986
    %v1009 = vmul.f32 %v987, %v987
    %v1010 = vmul.f32 %v988, %v988
    %v1011 = vsel %vm138, %v1007, 0.0
    %1012 = vadd.xlane.f32.xlu0 %v1011
    %v1013 = vpop.xlane.xlu0 %1012
    %v1014 = vsel %vm138, %v1008, 0.0
    %1015 = vadd.xlane.f32.xlu0 %v1014
    %v1016 = vpop.xlane.xlu0 %1015
    %v1017 = vsel %vm138, %v1009, 0.0
    %1018 = vadd.xlane.f32.xlu0 %v1017
    %v1019 = vpop.xlane.xlu0 %1018
    %v1020 = vsel %vm138, %v1010, 0.0
    %1021 = vadd.xlane.f32.xlu0 %v1020
    %v1022 = vpop.xlane.xlu0 %1021
    %v1023 = vmul.f32 %v1013, %v468
    %v1024 = vmul.f32 %v1016, %v468
    %v1025 = vmul.f32 %v1019, %v468
    %v1026 = vmul.f32 %v1022, %v468
    %v1027 = vmul.f32 %v1003, %v1003
    %v1028 = vmul.f32 %v1004, %v1004
    %v1029 = vmul.f32 %v1005, %v1005
    %v1030 = vmul.f32 %v1006, %v1006
    %v1031 = vsub.f32 %v1023, %v1027
    %v1032 = vsub.f32 %v1024, %v1028
    %v1033 = vsub.f32 %v1025, %v1029
    %v1034 = vsub.f32 %v1026, %v1030
    %v1035 = vmax.f32 %v1031, 0.0
    %v1036 = vmax.f32 %v1032, 0.0
    %v1037 = vmax.f32 %v1033, 0.0
    %v1038 = vmax.f32 %v1034, 0.0
    %v1039 = vsub.f32 %v985, %v1003
    %v1040 = vsub.f32 %v986, %v1004
    %v1041 = vsub.f32 %v987, %v1005
    %v1042 = vsub.f32 %v988, %v1006
    %v1043 = vadd.f32 %v1035, 1e-05
    %v1044 = vadd.f32 %v1036, 1e-05
    %v1045 = vadd.f32 %v1037, 1e-05
    %v1046 = vadd.f32 %v1038, 1e-05
    %v1047 = vrsqrt.pop %v1043
    %v1048 = vrsqrt.pop %v1044
    %v1049 = vrsqrt.pop %v1045
    %v1050 = vrsqrt.pop %v1046
    %v1051 = vmul.f32 %v1039, %v1047
    %v1052 = vmul.f32 %v1040, %v1048
    %v1053 = vmul.f32 %v1041, %v1049
    %v1054 = vmul.f32 %v1042, %v1050
    %v1056 = vlaneseq
    %v1057 = vshrl.u32 %v1056, 7
    %v1058 = vsub.s32 0, %v1057
    %v1059 = vrot.slane %v989, %v1058
    %v1061 = vmul.f32 %v1051, %v1059
    %v1062 = vmul.f32 %v1052, %v1059
    %v1063 = vmul.f32 %v1053, %v1059
    %v1064 = vmul.f32 %v1054, %v1059
    %v1066 = vlaneseq
    %v1067 = vshrl.u32 %v1066, 7
    %v1068 = vsub.s32 0, %v1067
    %v1069 = vrot.slane %v990, %v1068
    %v1071 = vadd.f32 %v1061, %v1069
    %v1072 = vadd.f32 %v1062, %v1069
    %v1073 = vadd.f32 %v1063, %v1069
    %v1074 = vadd.f32 %v1064, %v1069
    %v1075 = vmul.f32 %v1071, 0.5
    %v1076 = vmul.f32 %v1072, 0.5
    %v1077 = vmul.f32 %v1073, 0.5
    %v1078 = vmul.f32 %v1074, 0.5
    %v1079 = vmul.f32 %v1071, 0.70710677
    %v1080 = vmul.f32 %v1072, 0.70710677
    %v1081 = vmul.f32 %v1073, 0.70710677
    %v1082 = vmul.f32 %v1074, 0.70710677
    %vm1083 = vcmp.ge.f32.partialorder %v1079, 0.0
    %vm1084 = vcmp.ge.f32.partialorder %v1080, 0.0
    %vm1085 = vcmp.ge.f32.partialorder %v1081, 0.0
    %vm1086 = vcmp.ge.f32.partialorder %v1082, 0.0
    %v1087 = vsel %vm1083, 1.0, -1.0
    %v1088 = vsel %vm1084, 1.0, -1.0
    %v1089 = vsel %vm1085, 1.0, -1.0
    %v1090 = vsel %vm1086, 1.0, -1.0
    %v1091 = vand.u32 2147483647, %v1079
    %v1092 = vand.u32 2147483647, %v1080
    %v1093 = vand.u32 2147483647, %v1081
    %v1094 = vand.u32 2147483647, %v1082
    %v1095 = vmul.f32 %v1091, 0.3275911
    %v1096 = vmul.f32 %v1092, 0.3275911
    %v1097 = vmul.f32 %v1093, 0.3275911
    %v1098 = vmul.f32 %v1094, 0.3275911
    %v1099 = vadd.f32 %v1095, 1.0
    %v1100 = vadd.f32 %v1096, 1.0
    %v1101 = vadd.f32 %v1097, 1.0
    %v1102 = vadd.f32 %v1098, 1.0
    %v1103 = vrcp.pop %v1099
    %v1104 = vrcp.pop %v1100
    %v1105 = vrcp.pop %v1101
    %v1106 = vrcp.pop %v1102
    %v1107 = vmul.f32 %v1103, 1.0614054
    %v1108 = vmul.f32 %v1104, 1.0614054
    %v1109 = vmul.f32 %v1105, 1.0614054
    %v1110 = vmul.f32 %v1106, 1.0614054
    %v1111 = vadd.f32 %v1107, -1.4531521
    %v1112 = vadd.f32 %v1108, -1.4531521
    %v1113 = vadd.f32 %v1109, -1.4531521
    %v1114 = vadd.f32 %v1110, -1.4531521
    %v1115 = vmul.f32 %v1111, %v1103
    %v1116 = vmul.f32 %v1112, %v1104
    %v1117 = vmul.f32 %v1113, %v1105
    %v1118 = vmul.f32 %v1114, %v1106
    %v1119 = vadd.f32 %v1115, 1.4214138
    %v1120 = vadd.f32 %v1116, 1.4214138
    %v1121 = vadd.f32 %v1117, 1.4214138
    %v1122 = vadd.f32 %v1118, 1.4214138
    %v1123 = vmul.f32 %v1119, %v1103
    %v1124 = vmul.f32 %v1120, %v1104
    %v1125 = vmul.f32 %v1121, %v1105
    %v1126 = vmul.f32 %v1122, %v1106
    %v1127 = vadd.f32 %v1123, -0.28449672
    %v1128 = vadd.f32 %v1124, -0.28449672
    %v1129 = vadd.f32 %v1125, -0.28449672
    %v1130 = vadd.f32 %v1126, -0.28449672
    %v1131 = vmul.f32 %v1127, %v1103
    %v1132 = vmul.f32 %v1128, %v1104
    %v1133 = vmul.f32 %v1129, %v1105
    %v1134 = vmul.f32 %v1130, %v1106
    %v1135 = vadd.f32 %v1131, 0.2548296
    %v1136 = vadd.f32 %v1132, 0.2548296
    %v1137 = vadd.f32 %v1133, 0.2548296
    %v1138 = vadd.f32 %v1134, 0.2548296
    %v1139 = vmul.f32 %v1135, %v1103
    %v1140 = vmul.f32 %v1136, %v1104
    %v1141 = vmul.f32 %v1137, %v1105
    %v1142 = vmul.f32 %v1138, %v1106
    %v1143 = vsub.f32 0.0, %v1091
    %v1144 = vsub.f32 0.0, %v1092
    %v1145 = vsub.f32 0.0, %v1093
    %v1146 = vsub.f32 0.0, %v1094
    %v1147 = vmul.f32 %v1143, %v1091
    %v1148 = vmul.f32 %v1144, %v1092
    %v1149 = vmul.f32 %v1145, %v1093
    %v1150 = vmul.f32 %v1146, %v1094
    %v1151 = vmul.f32 %v1147, 1.442695
    %v1152 = vpow.pop %v1151
    %v1153 = vmul.f32 %v1148, 1.442695
    %v1154 = vpow.pop %v1153
    %v1155 = vmul.f32 %v1149, 1.442695
    %v1156 = vpow.pop %v1155
    %v1157 = vmul.f32 %v1150, 1.442695
    %v1158 = vpow.pop %v1157
    %v1159 = vmul.f32 %v1139, %v1152
    %v1160 = vmul.f32 %v1140, %v1154
    %v1161 = vmul.f32 %v1141, %v1156
    %v1162 = vmul.f32 %v1142, %v1158
    %v1163 = vsub.f32 1.0, %v1159
    %v1164 = vsub.f32 1.0, %v1160
    %v1165 = vsub.f32 1.0, %v1161
    %v1166 = vsub.f32 1.0, %v1162
    %v1167 = vmul.f32 %v1087, %v1163
    %v1168 = vmul.f32 %v1088, %v1164
    %v1169 = vmul.f32 %v1089, %v1165
    %v1170 = vmul.f32 %v1090, %v1166
    %v1171 = vadd.f32 %v1167, 1.0
    %v1172 = vadd.f32 %v1168, 1.0
    %v1173 = vadd.f32 %v1169, 1.0
    %v1174 = vadd.f32 %v1170, 1.0
    %v1175 = vmul.f32 %v1075, %v1171
    %v1176 = vmul.f32 %v1076, %v1172
    %v1177 = vmul.f32 %v1077, %v1173
    %v1178 = vmul.f32 %v1078, %v1174
    %v1179 = vadd.f32 %v103, %v1175
    %v1180 = vadd.f32 %v104, %v1176
    %v1181 = vadd.f32 %v105, %v1177
    %v1182 = vadd.f32 %v106, %v1178
    %1183 = vst.msk [vmem:[#allocation8] sm:$0xff] %vm138, %v1179
    %1184 = vst.msk [vmem:[#allocation8 + $0x8] sm:$0xff] %vm138, %v1180
    %1185 = vst.msk [vmem:[#allocation8 + $0x10] sm:$0xff] %vm138, %v1181
    %1186 = vst.msk [vmem:[#allocation8 + $0x18] sm:$0xff] %vm138, %v1182
    // Predicated region
    $region50: #{enc_conv_block.1} parent=1 // pred_check
      _
    $region51: #{enc_conv_block.1} parent=1 // pred_check_branch
      %1188 = sbr.rel (0) target = $region53
    $region52: #{enc_conv_block.1} parent=1 // pred_region
      %s1190 = ssub.s32 512, 512
      %1191 = vsyncadd [#allocation4], %s1190
      %s1192 = sshll.u32 [#allocation8], 4
      %s1193 = int_to_ptr.vmem [resolvable:$true] %s1192
      %1198 = dma.vmem_to_hbm [thread:$0]  %s1193, 512, %s9, [#allocation4], 128, 128, 8
    $region53: #{enc_conv_block.1} parent=1 // pred_fallthru
      _
    // Predicated region
    $region54: #{enc_conv_block.1} parent=1 // pred_check
      _
    $region55: #{enc_conv_block.1} parent=1 // pred_check_branch
      %1200 = sbr.rel (0) target = $region57
    $region56: #{enc_conv_block.1} parent=1 // pred_region
      %1201 = dma.done [#allocation4], 512
    $region57: #{enc_conv_block.1} parent=1 // pred_fallthru
      _
    %1202 = vsyncpa [#allocation3], 1
    %1203 = vsyncpa [#allocation6], 1
    %1204 = vsyncpa [#allocation4], 1

</llo_original>
